<compile_context>
chip_gen: v7x
topology: tpu7x:2x2x1
jax: 0.10.0
libtpu: 0.0.40
codegen_flags: <defaults>
</compile_context>

<pallas_src>
import jax
import jax.numpy as jnp
from jax import lax
from jax.experimental import pallas as pl
from jax.experimental.pallas import tpu as pltpu


def _poolup_kernel(x_ref, a_ref, b_ref, o_ref):
    # x_ref / o_ref: (1, Hp, Wp, TC)   a_ref: (Hp, Hp) f32   b_ref: (Wp, Wp) f32
    Hp = a_ref.shape[0]
    Wp = b_ref.shape[0]
    TC = x_ref.shape[-1]

    x = x_ref[0].astype(jnp.float32)                                 # (Hp, Wp, TC)

    # H-axis pool+upsample: one (Hp,Hp) x (Hp, Wp*TC) MXU matmul (wide lane dim).
    tmp = jnp.dot(a_ref[...], x.reshape(Hp, Wp * TC),
                  preferred_element_type=jnp.float32)                # (Hp, Wp*TC)
    tmp = tmp.reshape(Hp, Wp, TC)

    # W-axis pool+upsample: batched (Wp,Wp) x (Wp,TC) matmul over the Hp rows.
    # y[h, j, c] = sum_q B[j, q] * tmp[h, q, c]; output stays channels-last,
    # no transpose needed (B is symmetric, passed untransposed).
    b_bc = jnp.broadcast_to(b_ref[...][None, :, :], (Hp, Wp, Wp))
    y = lax.dot_general(
        b_bc, tmp,
        dimension_numbers=(((2,), (1,)), ((0,), (0,))),
        preferred_element_type=jnp.float32)                          # (Hp, Wp, TC)

    o_ref[0] = y.astype(o_ref.dtype)


def _pick_channel_block(C, Hp, Wp, itemsize, budget_bytes):
    """Largest divisor of C whose double-buffered in+out blocks + f32 temps fit budget."""
    def footprint(tc):
        blk = tc * Hp * Wp
        io = 4 * blk * itemsize   # input + output block, double-buffered by the pipeline
        tmps = 3 * blk * 4        # f32 cast / tmp / y inside the kernel
        return io + tmps

    best = 1
    for tc in range(1, C + 1):
        if C % tc == 0 and footprint(tc) <= budget_bytes:
            best = tc
    return best


def pool_up(x, pool_kernel_size, *, vmem_budget_bytes=40 * 1024 * 1024):
    """Pallas PoolUp.forward for NCHW float input.

    Note: output spatial size is (k*floor(H/k), k*floor(W/k)) — identical to
    AvgPool2d(k, stride=k) followed by Upsample(scale_factor=k) in PyTorch.
    """
    N, C, H, W = x.shape
    k = int(pool_kernel_size)
    Hp, Wp = (H // k) * k, (W // k) * k
    xc = x[:, :, :Hp, :Wp]

    # Separable operators, built in f32 for exact averaging. B is symmetric.
    rows = jnp.arange(Hp)
    A = ((rows[:, None] // k) == (rows[None, :] // k)).astype(jnp.float32) / k
    cols = jnp.arange(Wp)
    B = ((cols[:, None] // k) == (cols[None, :] // k)).astype(jnp.float32) / k

    # Channels-last so the lane dim is C (multiple of 128 for ResNet50 feature maps).
    x_nhwc = jnp.transpose(xc, (0, 2, 3, 1))                         # (N, Hp, Wp, C)

    TC = _pick_channel_block(C, Hp, Wp, x.dtype.itemsize, vmem_budget_bytes)
    grid = (N, C // TC)

    out = pl.pallas_call(
        _poolup_kernel,
        out_shape=jax.ShapeDtypeStruct((N, Hp, Wp, C), x.dtype),
        grid=grid,
        in_specs=[
            pl.BlockSpec((1, Hp, Wp, TC), lambda n, c: (n, 0, 0, c)),
            pl.BlockSpec((Hp, Hp), lambda n, c: (0, 0)),
            pl.BlockSpec((Wp, Wp), lambda n, c: (0, 0)),
        ],
        out_specs=pl.BlockSpec((1, Hp, Wp, TC), lambda n, c: (n, 0, 0, c)),
        compiler_params=pltpu.CompilerParams(
            dimension_semantics=("parallel", "parallel"),
            vmem_limit_bytes=56 * 1024 * 1024,
        ),
    )(x_nhwc, A, B)

    return jnp.transpose(out, (0, 3, 1, 2))                          # back to NCHW


def _ref_pool_up(x, k):
    # Pure-JAX reference (block mean then nearest-neighbor repeat).
    N, C, H, W = x.shape
    Hp, Wp = (H // k) * k, (W // k) * k
    xc = x[:, :, :Hp, :Wp]
    pooled = xc.reshape(N, C, Hp // k, k, Wp // k, k).mean(axis=(3, 5))
    return jnp.repeat(jnp.repeat(pooled, k, axis=2), k, axis=3)


if __name__ == "__main__":
    key = jax.random.PRNGKey(0)

    # Case 1: small shapes consistent with the module (divisible spatial, k=2).
    N, C, H, W = 2, 4, 16, 16
    k1 = 2
    x1 = jax.random.normal(key, (N, C, H, W), dtype=jnp.float32)
    y1 = jax.block_until_ready(pool_up(x1, k1))
    y1_ref = _ref_pool_up(x1, k1)
    assert y1.shape == y1_ref.shape, (y1.shape, y1_ref.shape)
    assert jnp.allclose(y1, y1_ref, atol=1e-5, rtol=1e-5), "case1 mismatch vs reference"

    # Case 2: non-pow2 pool size and spatial not divisible by k (exercises floor-crop path).
    k2 = 3
    x2 = jax.random.normal(jax.random.PRNGKey(1), (1, 8, 14, 14), dtype=jnp.float32)
    y2 = jax.block_until_ready(pool_up(x2, k2))
    y2_ref = _ref_pool_up(x2, k2)
    assert y2.shape == y2_ref.shape, (y2.shape, y2_ref.shape)
    assert jnp.allclose(y2, y2_ref, atol=1e-5, rtol=1e-5), "case2 mismatch vs reference"

    print("KERNEL_OK")
</pallas_src>

<mosaic_0001>
module attributes {stable_mosaic.version = 11 : i64} {
  func.func @_poolup_kernel(%arg0: i32, %arg1: i32, %arg2: memref<1x16x16x4xf32, #tpu.memory_space<vmem>>, %arg3: memref<16x16xf32, #tpu.memory_space<vmem>>, %arg4: memref<16x16xf32, #tpu.memory_space<vmem>>, %arg5: memref<1x16x16x4xf32, #tpu.memory_space<vmem>>) attributes {dimension_semantics = [#tpu.dimension_semantics<parallel>, #tpu.dimension_semantics<parallel>], iteration_bounds = array<i64: 2, 1>, scalar_prefetch = 0 : i64, scratch_operands = 0 : i64, tpu.core_type = #tpu.core_type<tc>, window_params = [{transform_indices = @transform_0, window_bounds = array<i64: 1, 16, 16, 4>}, {pipeline_mode = #tpu.pipeline_mode<synchronous>, transform_indices = @transform_1, window_bounds = array<i64: 16, 16>}, {pipeline_mode = #tpu.pipeline_mode<synchronous>, transform_indices = @transform_2, window_bounds = array<i64: 16, 16>}, {transform_indices = @transform_3, window_bounds = array<i64: 1, 16, 16, 4>}]} {
    %c0 = arith.constant 0 : index
    %c0_0 = arith.constant 0 : index
    %c0_1 = arith.constant 0 : index
    %c0_2 = arith.constant 0 : index
    %0 = vector.load %arg2[%c0, %c0_0, %c0_1, %c0_2] : memref<1x16x16x4xf32, #tpu.memory_space<vmem>>, vector<1x16x16x4xf32>
    %1 = vector.shape_cast %0 : vector<1x16x16x4xf32> to vector<16x16x4xf32>
    %c0_3 = arith.constant 0 : index
    %c0_4 = arith.constant 0 : index
    %2 = vector.load %arg3[%c0_3, %c0_4] : memref<16x16xf32, #tpu.memory_space<vmem>>, vector<16x16xf32>
    %3 = vector.shape_cast %1 : vector<16x16x4xf32> to vector<16x64xf32>
    %cst = arith.constant dense<0.000000e+00> : vector<16x64xf32>
    %4 = tpu.matmul %2, %3, %cst {dimension_numbers = #tpu.dot_dimension_numbers<[1], [0], [0], [1], [0, 0, 1, 1], [], []>} : vector<16x16xf32>, vector<16x64xf32>, vector<16x64xf32> -> vector<16x64xf32>
    %5 = vector.shape_cast %4 : vector<16x64xf32> to vector<16x16x4xf32>
    %c0_5 = arith.constant 0 : index
    %c0_6 = arith.constant 0 : index
    %6 = vector.load %arg4[%c0_5, %c0_6] : memref<16x16xf32, #tpu.memory_space<vmem>>, vector<16x16xf32>
    %7 = vector.shape_cast %6 : vector<16x16xf32> to vector<1x16x16xf32>
    %8 = vector.shape_cast %7 : vector<1x16x16xf32> to vector<1x16x16xf32>
    %9 = vector.broadcast %8 : vector<1x16x16xf32> to vector<16x16x16xf32>
    %cst_7 = arith.constant dense<0.000000e+00> : vector<16x16x4xf32>
    %10 = tpu.matmul %9, %5, %cst_7 {dimension_numbers = #tpu.dot_dimension_numbers<[2], [1], [1], [2], [0, 0, 0, 1, 1, 2], [0], [0]>} : vector<16x16x16xf32>, vector<16x16x4xf32>, vector<16x16x4xf32> -> vector<16x16x4xf32>
    %c0_8 = arith.constant 0 : index
    %c0_9 = arith.constant 0 : index
    %c0_10 = arith.constant 0 : index
    %c0_11 = arith.constant 0 : index
    %11 = vector.load %arg5[%c0_8, %c0_9, %c0_10, %c0_11] : memref<1x16x16x4xf32, #tpu.memory_space<vmem>>, vector<1x16x16x4xf32>
    %12 = vector.shape_cast %11 : vector<1x16x16x4xf32> to vector<16x16x4xf32>
    %13 = vector.shape_cast %10 : vector<16x16x4xf32> to vector<1x16x16x4xf32>
    tpu.vector_store %arg5[%c0_8, %c0_9, %c0_10, %c0_11], %13 {strides = array<i32>} : memref<1x16x16x4xf32, #tpu.memory_space<vmem>>, vector<1x16x16x4xf32>,
    return
  }
  func.func @transform_0(%arg0: i32, %arg1: i32) -> (i32, i32, i32, i32) {
    %c0_i32 = arith.constant 0 : i32
    %c0_i32_0 = arith.constant 0 : i32
    %c0_i32_1 = arith.constant 0 : i32
    return %arg0, %c0_i32, %c0_i32_0, %arg1 : i32, i32, i32, i32
  }
  func.func @transform_1(%arg0: i32, %arg1: i32) -> (i32, i32) {
    %c0_i32 = arith.constant 0 : i32
    %c0_i32_0 = arith.constant 0 : i32
    %c0_i32_1 = arith.constant 0 : i32
    return %c0_i32, %c0_i32_0 : i32, i32
  }
  func.func @transform_2(%arg0: i32, %arg1: i32) -> (i32, i32) {
    %c0_i32 = arith.constant 0 : i32
    %c0_i32_0 = arith.constant 0 : i32
    %c0_i32_1 = arith.constant 0 : i32
    return %c0_i32, %c0_i32_0 : i32, i32
  }
  func.func @transform_3(%arg0: i32, %arg1: i32) -> (i32, i32, i32, i32) {
    %c0_i32 = arith.constant 0 : i32
    %c0_i32_0 = arith.constant 0 : i32
    %c0_i32_1 = arith.constant 0 : i32
    return %arg0, %c0_i32, %c0_i32_0, %arg1 : i32, i32, i32, i32
  }
}

</mosaic_0001>

<llo_original>
// kernel: tpu_custom_call.1
$region0: #{tpu_custom_call.1}
  #allocation0 [shape = 'u32[]', space=smem, size = 0x4, offset = 0x4, fixed_abs, tag = 'smem constant byte address 0x4 - core index']
  #allocation1 [shape = 'u32[144,128]{1,0:T(1,128)}', space=vmem, size = 0x12000, scoped, tag = 'internal scratch']
  %s0 = inlined_call_operand.vmem [shape: f32[2,16,16,4], index: 0, kind: input, shape index: {}]
  %s1 = inlined_call_operand.vmem [shape: f32[16,16], index: 1, kind: input, shape index: {}]
  %s2 = inlined_call_operand.vmem [shape: f32[16,16], index: 2, kind: input, shape index: {}]
  %s3 = inlined_call_operand.vmem [shape: f32[2,16,16,4], index: 3, kind: output, shape index: {}]
  %s4 = sld [smem:[#allocation0]]
  $region45: #{tpu_custom_call.1} parent=0
    _
  %s6 = ssub.s32 1, %s4
  %s7 = scalar_select 0, %s6, %s4
  loop: start=0, step=1, limit=4
  $region2: #{tpu_custom_call.1} parent=0 // loop_pre_header
    _
  $region3: #{tpu_custom_call.1} parent=0 // loop_header
    %s9 = sphi 0, %s13
    %p10 = scmp.ge.s32.totalorder %s9, 4
    %s16 = sphi 0, %s28
    %s17 = sphi 0, %s24
    %s18 = sphi 0, %s16
    %s19 = sphi 0, %s17
    %s20 = sphi 0, %s18
    %s21 = sphi 0, %s19
    %s33 = sphi 0, %s35
    %s36 = sphi 0, %s33
    %s37 = sphi 0, %s36
    %s53 = sphi 0, %s37
    %s57 = sphi 0, %s57
    %s59 = sphi 0, %s57
    %s60 = sphi 0, %s59
    %s74 = sphi 0, %s60
    %s78 = sphi 0, %s78
    %s80 = sphi 0, %s78
    %s81 = sphi 0, %s80
    %s95 = sphi 0, %s81
    %s103 = sphi 0, %s105
    %s106 = sphi 0, %s103
    %s107 = sphi 0, %s106
    %s123 = sphi 0, %s107
  $region4: #{tpu_custom_call.1} parent=0 // loop_header_branch
    %12 = sbr.rel (%p10) target = $region8
  $region5: #{tpu_custom_call.1} parent=0 // loop_body
    %s14 = ssub.s32 %s9, 1
    %s15 = ssub.s32 %s9, 2
    %s22 = sadd.s32 1, %s17
    %p23 = scmp.ge.s32.totalorder %s22, 1
    %s24 = scalar_select %p23, 0, %s22
    %s25 = sadd.s32 1, %s16
    %s26 = scalar_select %p23, %s25, %s16
    %p27 = scmp.ge.s32.totalorder %s26, 2
    %s28 = scalar_select %p27, 0, %s26
    %s29 = ssub.s32 %s16, %s28
    %s30 = ssub.s32 %s17, %s24
    %s31 = sor.u32 %s29, %s30
    %p32 = scmp.eq.s32.totalorder %s31, 0
    %s34 = sadd.s32 %s33, 1
    %s35 = scalar_select %p32, %s33, %s34
    %p38 = pneg %p32
    %p39 = scmp.eq.s32.totalorder %s9, 1
    %p40 = por %p38, %p39
    %p41 = scmp.ne.s32.totalorder %s33, %s36
    %p42 = scmp.eq.s32.totalorder %s9, 0
    %p43 = por %p41, %p42
    %p44 = scmp.ne.s32.totalorder %s33, %s36
    %p45 = scmp.eq.s32.totalorder %s14, 1
    %p46 = por %p44, %p45
    %p47 = scmp.ne.s32.totalorder %s36, %s37
    %p48 = scmp.eq.s32.totalorder %s14, 0
    %p49 = por %p47, %p48
    %p50 = scmp.ne.s32.totalorder %s36, %s37
    %p51 = scmp.eq.s32.totalorder %s15, 1
    %p52 = por %p50, %p51
    %p54 = scmp.ne.s32.totalorder %s37, %s53
    %p55 = scmp.eq.s32.totalorder %s15, 0
    %p56 = por %p54, %p55
    %s58 = sadd.s32 %s57, 1
    %p61 = scmp.eq.s32.totalorder %s9, 1
    %p62 = scmp.ne.s32.totalorder %s57, %s59
    %p63 = scmp.eq.s32.totalorder %s9, 0
    %p64 = por %p62, %p63
    %p65 = scmp.ne.s32.totalorder %s57, %s59
    %p66 = scmp.eq.s32.totalorder %s14, 1
    %p67 = por %p65, %p66
    %p68 = scmp.ne.s32.totalorder %s59, %s60
    %p69 = scmp.eq.s32.totalorder %s14, 0
    %p70 = por %p68, %p69
    %p71 = scmp.ne.s32.totalorder %s59, %s60
    %p72 = scmp.eq.s32.totalorder %s15, 1
    %p73 = por %p71, %p72
    %p75 = scmp.ne.s32.totalorder %s60, %s74
    %p76 = scmp.eq.s32.totalorder %s15, 0
    %p77 = por %p75, %p76
    %s79 = sadd.s32 %s78, 1
    %p82 = scmp.eq.s32.totalorder %s9, 1
    %p83 = scmp.ne.s32.totalorder %s78, %s80
    %p84 = scmp.eq.s32.totalorder %s9, 0
    %p85 = por %p83, %p84
    %p86 = scmp.ne.s32.totalorder %s78, %s80
    %p87 = scmp.eq.s32.totalorder %s14, 1
    %p88 = por %p86, %p87
    %p89 = scmp.ne.s32.totalorder %s80, %s81
    %p90 = scmp.eq.s32.totalorder %s14, 0
    %p91 = por %p89, %p90
    %p92 = scmp.ne.s32.totalorder %s80, %s81
    %p93 = scmp.eq.s32.totalorder %s15, 1
    %p94 = por %p92, %p93
    %p96 = scmp.ne.s32.totalorder %s81, %s95
    %p97 = scmp.eq.s32.totalorder %s15, 0
    %p98 = por %p96, %p97
    %s99 = ssub.s32 %s16, %s28
    %s100 = ssub.s32 %s17, %s24
    %s101 = sor.u32 %s99, %s100
    %p102 = scmp.eq.s32.totalorder %s101, 0
    %s104 = sadd.s32 %s103, 1
    %s105 = scalar_select %p102, %s103, %s104
    %p108 = pneg %p102
    %p109 = scmp.eq.s32.totalorder %s9, 1
    %p110 = por %p108, %p109
    %p111 = scmp.ne.s32.totalorder %s103, %s106
    %p112 = scmp.eq.s32.totalorder %s9, 0
    %p113 = por %p111, %p112
    %p114 = scmp.ne.s32.totalorder %s103, %s106
    %p115 = scmp.eq.s32.totalorder %s14, 1
    %p116 = por %p114, %p115
    %p117 = scmp.ne.s32.totalorder %s106, %s107
    %p118 = scmp.eq.s32.totalorder %s14, 0
    %p119 = por %p117, %p118
    %p120 = scmp.ne.s32.totalorder %s106, %s107
    %p121 = scmp.eq.s32.totalorder %s15, 1
    %p122 = por %p120, %p121
    %p124 = scmp.ne.s32.totalorder %s107, %s123
    %p125 = scmp.eq.s32.totalorder %s15, 0
    %p126 = por %p124, %p125
    %p127 = scmp.le.s32.totalorder 1, %s9
    %p128 = scmp.lt.s32.totalorder %s9, 3
    %p129 = pnand %p127, %p128
    %p130 = pneg %p129
    // Predicated region
    $region9: #{tpu_custom_call.1} parent=5 // pred_check
      _
    $region10: #{tpu_custom_call.1} parent=5 // pred_check_branch
      %132 = sbr.rel (%p129) target = $region12
    $region11: #{tpu_custom_call.1} parent=5 // pred_region
      %s133 = ssub.s32 %s9, 1
      // Predicated region
      $region13: #{tpu_custom_call.1} parent=11 // pred_check
        %p134 = pneg %p70
      $region14: #{tpu_custom_call.1} parent=11 // pred_check_branch
        %136 = sbr.rel (%p134) target = $region16
      $region15: #{tpu_custom_call.1} parent=11 // pred_region
        _
      $region16: #{tpu_custom_call.1} parent=11 // pred_fallthru
        _
      // Predicated region
      $region17: #{tpu_custom_call.1} parent=11 // pred_check
        %p137 = pneg %p91
      $region18: #{tpu_custom_call.1} parent=11 // pred_check_branch
        %139 = sbr.rel (%p137) target = $region20
      $region19: #{tpu_custom_call.1} parent=11 // pred_region
        _
      $region20: #{tpu_custom_call.1} parent=11 // pred_fallthru
        _
    $region12: #{tpu_custom_call.1} parent=5 // pred_fallthru
      _
    %p140 = scmp.lt.s32.totalorder %s9, 2
    // Predicated region
    $region21: #{tpu_custom_call.1} parent=5 // pred_check
      %p141 = pneg %p140
    $region22: #{tpu_custom_call.1} parent=5 // pred_check_branch
      %143 = sbr.rel (%p141) target = $region24
    $region23: #{tpu_custom_call.1} parent=5 // pred_region
      // Predicated region
      $region25: #{tpu_custom_call.1} parent=23 // pred_check
        %p144 = pneg %p43
      $region26: #{tpu_custom_call.1} parent=23 // pred_check_branch
        %146 = sbr.rel (%p144) target = $region28
      $region27: #{tpu_custom_call.1} parent=23 // pred_region
        %p147 = scmp.lt.s32.totalorder %s16, 1
        %s148 = scalar_select %p147, %s16, 1
        %p149 = scmp.lt.s32.totalorder %s17, 0
        %s150 = scalar_select %p149, %s17, 0
        %s151 = smul.addr %s148, 32
        %s152 = sadd.s32 %s150, %s151
        %s153 = smul.addr %s152, 8
        %s154 = scalar_lea.vmem %s0, %s153
      $region28: #{tpu_custom_call.1} parent=23 // pred_fallthru
        _
    $region24: #{tpu_custom_call.1} parent=5 // pred_fallthru
      _
    %p155 = scmp.le.s32.totalorder 1, %s9
    %p156 = scmp.lt.s32.totalorder %s9, 3
    %p157 = pnand %p155, %p156
    %p158 = pneg %p157
    // Predicated region
    $region29: #{tpu_custom_call.1} parent=5 // pred_check
      _
    $region30: #{tpu_custom_call.1} parent=5 // pred_check_branch
      %160 = sbr.rel (%p157) target = $region32
    $region31: #{tpu_custom_call.1} parent=5 // pred_region
      %s161 = ssub.s32 %s9, 1
      %p162 = scmp.lt.s32.totalorder %s18, 1
      %s163 = scalar_select %p162, %s18, 1
      %p164 = scmp.lt.s32.totalorder %s19, 0
      %s165 = scalar_select %p164, %s19, 0
      %s166 = smul.addr %s163, 32
      %s167 = sadd.s32 %s165, %s166
      %s168 = smul.addr %s167, 8
      %s169 = scalar_lea.vmem %s0, %s168
      %p170 = pneg %p49
      %p171 = pneg %p46
      %p172 = pneg %p70
      %p173 = pneg %p67
      %p174 = pneg %p91
      %p175 = pneg %p88
      %p176 = pneg %p119
      %p177 = pneg %p116
      %p178 = scmp.lt.s32.totalorder %s18, 1
      %s179 = scalar_select %p178, %s18, 1
      %p180 = scmp.lt.s32.totalorder %s19, 0
      %s181 = scalar_select %p180, %s19, 0
      %s182 = smul.addr %s179, 32
      %s183 = sadd.s32 %s181, %s182
      %s184 = smul.addr %s183, 8
      %s185 = scalar_lea.vmem %s3, %s184
      %p186 = scmp.lt.s32.totalorder %s18, 1
      %s187 = scalar_select %p186, %s18, 1
      %p188 = scmp.lt.s32.totalorder %s19, 0
      %s189 = scalar_select %p188, %s19, 0
      %s190 = smul.addr %s187, 32
      %s191 = sadd.s32 %s189, %s190
      %s192 = smul.addr %s191, 8
      %s193 = scalar_lea.vmem %s0, %s192
      %p194 = scmp.lt.s32.totalorder %s18, 1
      %s195 = scalar_select %p194, %s18, 1
      %p196 = scmp.lt.s32.totalorder %s19, 0
      %s197 = scalar_select %p196, %s19, 0
      %s198 = smul.addr %s195, 32
      %s199 = sadd.s32 %s197, %s198
      %s200 = smul.addr %s199, 8
      %s201 = scalar_lea.vmem %s3, %s200
      %v202 = vld [vmem:[%s193] sm:$0xff]
      %v203 = vld [vmem:[%s193 + $0x8] sm:$0xff]
      %v204 = vld [vmem:[%s193 + $0x10] sm:$0xff]
      %v205 = vld [vmem:[%s193 + $0x18] sm:$0xff]
      %v206 = vld [vmem:[%s193 + $0x20] sm:$0xff]
      %v207 = vld [vmem:[%s193 + $0x28] sm:$0xff]
      %v208 = vld [vmem:[%s193 + $0x30] sm:$0xff]
      %v209 = vld [vmem:[%s193 + $0x38] sm:$0xff]
      %v210 = vld [vmem:[%s193 + $0x40] sm:$0xff]
      %v211 = vld [vmem:[%s193 + $0x48] sm:$0xff]
      %v212 = vld [vmem:[%s193 + $0x50] sm:$0xff]
      %v213 = vld [vmem:[%s193 + $0x58] sm:$0xff]
      %v214 = vld [vmem:[%s193 + $0x60] sm:$0xff]
      %v215 = vld [vmem:[%s193 + $0x68] sm:$0xff]
      %v216 = vld [vmem:[%s193 + $0x70] sm:$0xff]
      %v217 = vld [vmem:[%s193 + $0x78] sm:$0xff]
      %v218 = vld [vmem:[%s193 + $0x80] sm:$0xff]
      %v219 = vld [vmem:[%s193 + $0x88] sm:$0xff]
      %v220 = vld [vmem:[%s193 + $0x90] sm:$0xff]
      %v221 = vld [vmem:[%s193 + $0x98] sm:$0xff]
      %v222 = vld [vmem:[%s193 + $0xa0] sm:$0xff]
      %v223 = vld [vmem:[%s193 + $0xa8] sm:$0xff]
      %v224 = vld [vmem:[%s193 + $0xb0] sm:$0xff]
      %v225 = vld [vmem:[%s193 + $0xb8] sm:$0xff]
      %v226 = vld [vmem:[%s193 + $0xc0] sm:$0xff]
      %v227 = vld [vmem:[%s193 + $0xc8] sm:$0xff]
      %v228 = vld [vmem:[%s193 + $0xd0] sm:$0xff]
      %v229 = vld [vmem:[%s193 + $0xd8] sm:$0xff]
      %v230 = vld [vmem:[%s193 + $0xe0] sm:$0xff]
      %v231 = vld [vmem:[%s193 + $0xe8] sm:$0xff]
      %v232 = vld [vmem:[%s193 + $0xf0] sm:$0xff]
      %v233 = vld [vmem:[%s193 + $0xf8] sm:$0xff]
      %v234 = vld [vmem:[%s1] sm:$0xff]
      %v235 = vld [vmem:[%s1 + $0x8] sm:$0xff]
      %v236 = vcombine.low %v202, %v206
      %v237 = vcombine.high %v202, %v206
      %v239 = vunpack.c.l.s4 1983009808
      %v240 = vunpack.c.0.s8 %v239
      %v241 = vlaneseq
      %v242 = vshrl.u32 %v241, 7
      %v243 = vsub.s32 %v240, %v242
      %v244 = vrot.slane %v236, %v243
      %v246 = vunpack.c.l.s4 1983009808
      %v247 = vunpack.c.0.s8 %v246
      %v248 = vlaneseq
      %v249 = vshrl.u32 %v248, 7
      %v250 = vsub.s32 %v247, %v249
      %v251 = vrot.slane %v237, %v250
      %v252 = vcombine.low %v204, %v208
      %v253 = vcombine.high %v204, %v208
      %v255 = vunpack.c.l.s4 1983009808
      %v256 = vunpack.c.0.s8 %v255
      %v257 = vlaneseq
      %v258 = vshrl.u32 %v257, 7
      %v259 = vsub.s32 %v256, %v258
      %v260 = vrot.slane %v252, %v259
      %v262 = vunpack.c.l.s4 1983009808
      %v263 = vunpack.c.0.s8 %v262
      %v264 = vlaneseq
      %v265 = vshrl.u32 %v264, 7
      %v266 = vsub.s32 %v263, %v265
      %v267 = vrot.slane %v253, %v266
      %v268 = vcombine.low %v210, %v214
      %v269 = vcombine.high %v210, %v214
      %v271 = vunpack.c.l.s4 1983009808
      %v272 = vunpack.c.0.s8 %v271
      %v273 = vlaneseq
      %v274 = vshrl.u32 %v273, 7
      %v275 = vsub.s32 %v272, %v274
      %v276 = vrot.slane %v268, %v275
      %v278 = vunpack.c.l.s4 1983009808
      %v279 = vunpack.c.0.s8 %v278
      %v280 = vlaneseq
      %v281 = vshrl.u32 %v280, 7
      %v282 = vsub.s32 %v279, %v281
      %v283 = vrot.slane %v269, %v282
      %v284 = vcombine.low %v212, %v216
      %v285 = vcombine.high %v212, %v216
      %v287 = vunpack.c.l.s4 1983009808
      %v288 = vunpack.c.0.s8 %v287
      %v289 = vlaneseq
      %v290 = vshrl.u32 %v289, 7
      %v291 = vsub.s32 %v288, %v290
      %v292 = vrot.slane %v284, %v291
      %v294 = vunpack.c.l.s4 1983009808
      %v295 = vunpack.c.0.s8 %v294
      %v296 = vlaneseq
      %v297 = vshrl.u32 %v296, 7
      %v298 = vsub.s32 %v295, %v297
      %v299 = vrot.slane %v285, %v298
      %v300 = vcombine.low %v244, %v260
      %v301 = vcombine.high %v244, %v260
      %v303 = vunpack.c.l.s4 1934713408
      %v304 = vunpack.c.0.s8 %v303
      %v305 = vlaneseq
      %v306 = vshrl.u32 %v305, 7
      %v307 = vsub.s32 %v304, %v306
      %v308 = vrot.slane %v300, %v307
      %v310 = vunpack.c.l.s4 1934713408
      %v311 = vunpack.c.0.s8 %v310
      %v312 = vlaneseq
      %v313 = vshrl.u32 %v312, 7
      %v314 = vsub.s32 %v311, %v313
      %v315 = vrot.slane %v301, %v314
      %v316 = vcombine.low %v251, %v267
      %v317 = vcombine.high %v251, %v267
      %v319 = vunpack.c.l.s4 1934713408
      %v320 = vunpack.c.0.s8 %v319
      %v321 = vlaneseq
      %v322 = vshrl.u32 %v321, 7
      %v323 = vsub.s32 %v320, %v322
      %v324 = vrot.slane %v316, %v323
      %v326 = vunpack.c.l.s4 1934713408
      %v327 = vunpack.c.0.s8 %v326
      %v328 = vlaneseq
      %v329 = vshrl.u32 %v328, 7
      %v330 = vsub.s32 %v327, %v329
      %v331 = vrot.slane %v317, %v330
      %v332 = vcombine.low %v276, %v292
      %v333 = vcombine.high %v276, %v292
      %v335 = vunpack.c.l.s4 1934713408
      %v336 = vunpack.c.0.s8 %v335
      %v337 = vlaneseq
      %v338 = vshrl.u32 %v337, 7
      %v339 = vsub.s32 %v336, %v338
      %v340 = vrot.slane %v332, %v339
      %v342 = vunpack.c.l.s4 1934713408
      %v343 = vunpack.c.0.s8 %v342
      %v344 = vlaneseq
      %v345 = vshrl.u32 %v344, 7
      %v346 = vsub.s32 %v343, %v345
      %v347 = vrot.slane %v333, %v346
      %v348 = vcombine.low %v283, %v299
      %v349 = vcombine.high %v283, %v299
      %v351 = vunpack.c.l.s4 1934713408
      %v352 = vunpack.c.0.s8 %v351
      %v353 = vlaneseq
      %v354 = vshrl.u32 %v353, 7
      %v355 = vsub.s32 %v352, %v354
      %v356 = vrot.slane %v348, %v355
      %v358 = vunpack.c.l.s4 1934713408
      %v359 = vunpack.c.0.s8 %v358
      %v360 = vlaneseq
      %v361 = vshrl.u32 %v360, 7
      %v362 = vsub.s32 %v359, %v361
      %v363 = vrot.slane %v349, %v362
      %v364 = vcombine.low %v308, %v340
      %v365 = vcombine.high %v308, %v340
      %v366 = vcombine.low %v315, %v347
      %v367 = vcombine.high %v315, %v347
      %v368 = vcombine.low %v324, %v356
      %v369 = vcombine.high %v324, %v356
      %v370 = vcombine.low %v331, %v363
      %v371 = vcombine.high %v331, %v363
      %v372 = vcombine.low %v218, %v222
      %v373 = vcombine.high %v218, %v222
      %v375 = vunpack.c.l.s4 1983009808
      %v376 = vunpack.c.0.s8 %v375
      %v377 = vlaneseq
      %v378 = vshrl.u32 %v377, 7
      %v379 = vsub.s32 %v376, %v378
      %v380 = vrot.slane %v372, %v379
      %v382 = vunpack.c.l.s4 1983009808
      %v383 = vunpack.c.0.s8 %v382
      %v384 = vlaneseq
      %v385 = vshrl.u32 %v384, 7
      %v386 = vsub.s32 %v383, %v385
      %v387 = vrot.slane %v373, %v386
      %v388 = vcombine.low %v220, %v224
      %v389 = vcombine.high %v220, %v224
      %v391 = vunpack.c.l.s4 1983009808
      %v392 = vunpack.c.0.s8 %v391
      %v393 = vlaneseq
      %v394 = vshrl.u32 %v393, 7
      %v395 = vsub.s32 %v392, %v394
      %v396 = vrot.slane %v388, %v395
      %v398 = vunpack.c.l.s4 1983009808
      %v399 = vunpack.c.0.s8 %v398
      %v400 = vlaneseq
      %v401 = vshrl.u32 %v400, 7
      %v402 = vsub.s32 %v399, %v401
      %v403 = vrot.slane %v389, %v402
      %v404 = vcombine.low %v226, %v230
      %v405 = vcombine.high %v226, %v230
      %v407 = vunpack.c.l.s4 1983009808
      %v408 = vunpack.c.0.s8 %v407
      %v409 = vlaneseq
      %v410 = vshrl.u32 %v409, 7
      %v411 = vsub.s32 %v408, %v410
      %v412 = vrot.slane %v404, %v411
      %v414 = vunpack.c.l.s4 1983009808
      %v415 = vunpack.c.0.s8 %v414
      %v416 = vlaneseq
      %v417 = vshrl.u32 %v416, 7
      %v418 = vsub.s32 %v415, %v417
      %v419 = vrot.slane %v405, %v418
      %v420 = vcombine.low %v228, %v232
      %v421 = vcombine.high %v228, %v232
      %v423 = vunpack.c.l.s4 1983009808
      %v424 = vunpack.c.0.s8 %v423
      %v425 = vlaneseq
      %v426 = vshrl.u32 %v425, 7
      %v427 = vsub.s32 %v424, %v426
      %v428 = vrot.slane %v420, %v427
      %v430 = vunpack.c.l.s4 1983009808
      %v431 = vunpack.c.0.s8 %v430
      %v432 = vlaneseq
      %v433 = vshrl.u32 %v432, 7
      %v434 = vsub.s32 %v431, %v433
      %v435 = vrot.slane %v421, %v434
      %v436 = vcombine.low %v380, %v396
      %v437 = vcombine.high %v380, %v396
      %v439 = vunpack.c.l.s4 1934713408
      %v440 = vunpack.c.0.s8 %v439
      %v441 = vlaneseq
      %v442 = vshrl.u32 %v441, 7
      %v443 = vsub.s32 %v440, %v442
      %v444 = vrot.slane %v436, %v443
      %v446 = vunpack.c.l.s4 1934713408
      %v447 = vunpack.c.0.s8 %v446
      %v448 = vlaneseq
      %v449 = vshrl.u32 %v448, 7
      %v450 = vsub.s32 %v447, %v449
      %v451 = vrot.slane %v437, %v450
      %v452 = vcombine.low %v387, %v403
      %v453 = vcombine.high %v387, %v403
      %v455 = vunpack.c.l.s4 1934713408
      %v456 = vunpack.c.0.s8 %v455
      %v457 = vlaneseq
      %v458 = vshrl.u32 %v457, 7
      %v459 = vsub.s32 %v456, %v458
      %v460 = vrot.slane %v452, %v459
      %v462 = vunpack.c.l.s4 1934713408
      %v463 = vunpack.c.0.s8 %v462
      %v464 = vlaneseq
      %v465 = vshrl.u32 %v464, 7
      %v466 = vsub.s32 %v463, %v465
      %v467 = vrot.slane %v453, %v466
      %v468 = vcombine.low %v412, %v428
      %v469 = vcombine.high %v412, %v428
      %v471 = vunpack.c.l.s4 1934713408
      %v472 = vunpack.c.0.s8 %v471
      %v473 = vlaneseq
      %v474 = vshrl.u32 %v473, 7
      %v475 = vsub.s32 %v472, %v474
      %v476 = vrot.slane %v468, %v475
      %v478 = vunpack.c.l.s4 1934713408
      %v479 = vunpack.c.0.s8 %v478
      %v480 = vlaneseq
      %v481 = vshrl.u32 %v480, 7
      %v482 = vsub.s32 %v479, %v481
      %v483 = vrot.slane %v469, %v482
      %v484 = vcombine.low %v419, %v435
      %v485 = vcombine.high %v419, %v435
      %v487 = vunpack.c.l.s4 1934713408
      %v488 = vunpack.c.0.s8 %v487
      %v489 = vlaneseq
      %v490 = vshrl.u32 %v489, 7
      %v491 = vsub.s32 %v488, %v490
      %v492 = vrot.slane %v484, %v491
      %v494 = vunpack.c.l.s4 1934713408
      %v495 = vunpack.c.0.s8 %v494
      %v496 = vlaneseq
      %v497 = vshrl.u32 %v496, 7
      %v498 = vsub.s32 %v495, %v497
      %v499 = vrot.slane %v485, %v498
      %v500 = vcombine.low %v444, %v476
      %v501 = vcombine.high %v444, %v476
      %v502 = vcombine.low %v451, %v483
      %v503 = vcombine.high %v451, %v483
      %v504 = vcombine.low %v460, %v492
      %v505 = vcombine.high %v460, %v492
      %v506 = vcombine.low %v467, %v499
      %v507 = vcombine.high %v467, %v499
      %v508 = vcombine.low %v203, %v207
      %v509 = vcombine.high %v203, %v207
      %v511 = vunpack.c.l.s4 1983009808
      %v512 = vunpack.c.0.s8 %v511
      %v513 = vlaneseq
      %v514 = vshrl.u32 %v513, 7
      %v515 = vsub.s32 %v512, %v514
      %v516 = vrot.slane %v508, %v515
      %v518 = vunpack.c.l.s4 1983009808
      %v519 = vunpack.c.0.s8 %v518
      %v520 = vlaneseq
      %v521 = vshrl.u32 %v520, 7
      %v522 = vsub.s32 %v519, %v521
      %v523 = vrot.slane %v509, %v522
      %v524 = vcombine.low %v205, %v209
      %v525 = vcombine.high %v205, %v209
      %v527 = vunpack.c.l.s4 1983009808
      %v528 = vunpack.c.0.s8 %v527
      %v529 = vlaneseq
      %v530 = vshrl.u32 %v529, 7
      %v531 = vsub.s32 %v528, %v530
      %v532 = vrot.slane %v524, %v531
      %v534 = vunpack.c.l.s4 1983009808
      %v535 = vunpack.c.0.s8 %v534
      %v536 = vlaneseq
      %v537 = vshrl.u32 %v536, 7
      %v538 = vsub.s32 %v535, %v537
      %v539 = vrot.slane %v525, %v538
      %v540 = vcombine.low %v211, %v215
      %v541 = vcombine.high %v211, %v215
      %v543 = vunpack.c.l.s4 1983009808
      %v544 = vunpack.c.0.s8 %v543
      %v545 = vlaneseq
      %v546 = vshrl.u32 %v545, 7
      %v547 = vsub.s32 %v544, %v546
      %v548 = vrot.slane %v540, %v547
      %v550 = vunpack.c.l.s4 1983009808
      %v551 = vunpack.c.0.s8 %v550
      %v552 = vlaneseq
      %v553 = vshrl.u32 %v552, 7
      %v554 = vsub.s32 %v551, %v553
      %v555 = vrot.slane %v541, %v554
      %v556 = vcombine.low %v213, %v217
      %v557 = vcombine.high %v213, %v217
      %v559 = vunpack.c.l.s4 1983009808
      %v560 = vunpack.c.0.s8 %v559
      %v561 = vlaneseq
      %v562 = vshrl.u32 %v561, 7
      %v563 = vsub.s32 %v560, %v562
      %v564 = vrot.slane %v556, %v563
      %v566 = vunpack.c.l.s4 1983009808
      %v567 = vunpack.c.0.s8 %v566
      %v568 = vlaneseq
      %v569 = vshrl.u32 %v568, 7
      %v570 = vsub.s32 %v567, %v569
      %v571 = vrot.slane %v557, %v570
      %v572 = vcombine.low %v516, %v532
      %v573 = vcombine.high %v516, %v532
      %v575 = vunpack.c.l.s4 1934713408
      %v576 = vunpack.c.0.s8 %v575
      %v577 = vlaneseq
      %v578 = vshrl.u32 %v577, 7
      %v579 = vsub.s32 %v576, %v578
      %v580 = vrot.slane %v572, %v579
      %v582 = vunpack.c.l.s4 1934713408
      %v583 = vunpack.c.0.s8 %v582
      %v584 = vlaneseq
      %v585 = vshrl.u32 %v584, 7
      %v586 = vsub.s32 %v583, %v585
      %v587 = vrot.slane %v573, %v586
      %v588 = vcombine.low %v523, %v539
      %v589 = vcombine.high %v523, %v539
      %v591 = vunpack.c.l.s4 1934713408
      %v592 = vunpack.c.0.s8 %v591
      %v593 = vlaneseq
      %v594 = vshrl.u32 %v593, 7
      %v595 = vsub.s32 %v592, %v594
      %v596 = vrot.slane %v588, %v595
      %v598 = vunpack.c.l.s4 1934713408
      %v599 = vunpack.c.0.s8 %v598
      %v600 = vlaneseq
      %v601 = vshrl.u32 %v600, 7
      %v602 = vsub.s32 %v599, %v601
      %v603 = vrot.slane %v589, %v602
      %v604 = vcombine.low %v548, %v564
      %v605 = vcombine.high %v548, %v564
      %v607 = vunpack.c.l.s4 1934713408
      %v608 = vunpack.c.0.s8 %v607
      %v609 = vlaneseq
      %v610 = vshrl.u32 %v609, 7
      %v611 = vsub.s32 %v608, %v610
      %v612 = vrot.slane %v604, %v611
      %v614 = vunpack.c.l.s4 1934713408
      %v615 = vunpack.c.0.s8 %v614
      %v616 = vlaneseq
      %v617 = vshrl.u32 %v616, 7
      %v618 = vsub.s32 %v615, %v617
      %v619 = vrot.slane %v605, %v618
      %v620 = vcombine.low %v555, %v571
      %v621 = vcombine.high %v555, %v571
      %v623 = vunpack.c.l.s4 1934713408
      %v624 = vunpack.c.0.s8 %v623
      %v625 = vlaneseq
      %v626 = vshrl.u32 %v625, 7
      %v627 = vsub.s32 %v624, %v626
      %v628 = vrot.slane %v620, %v627
      %v630 = vunpack.c.l.s4 1934713408
      %v631 = vunpack.c.0.s8 %v630
      %v632 = vlaneseq
      %v633 = vshrl.u32 %v632, 7
      %v634 = vsub.s32 %v631, %v633
      %v635 = vrot.slane %v621, %v634
      %v636 = vcombine.low %v580, %v612
      %v637 = vcombine.high %v580, %v612
      %v638 = vcombine.low %v587, %v619
      %v639 = vcombine.high %v587, %v619
      %v640 = vcombine.low %v596, %v628
      %v641 = vcombine.high %v596, %v628
      %v642 = vcombine.low %v603, %v635
      %v643 = vcombine.high %v603, %v635
      %v644 = vcombine.low %v219, %v223
      %v645 = vcombine.high %v219, %v223
      %v647 = vunpack.c.l.s4 1983009808
      %v648 = vunpack.c.0.s8 %v647
      %v649 = vlaneseq
      %v650 = vshrl.u32 %v649, 7
      %v651 = vsub.s32 %v648, %v650
      %v652 = vrot.slane %v644, %v651
      %v654 = vunpack.c.l.s4 1983009808
      %v655 = vunpack.c.0.s8 %v654
      %v656 = vlaneseq
      %v657 = vshrl.u32 %v656, 7
      %v658 = vsub.s32 %v655, %v657
      %v659 = vrot.slane %v645, %v658
      %v660 = vcombine.low %v221, %v225
      %v661 = vcombine.high %v221, %v225
      %v663 = vunpack.c.l.s4 1983009808
      %v664 = vunpack.c.0.s8 %v663
      %v665 = vlaneseq
      %v666 = vshrl.u32 %v665, 7
      %v667 = vsub.s32 %v664, %v666
      %v668 = vrot.slane %v660, %v667
      %v670 = vunpack.c.l.s4 1983009808
      %v671 = vunpack.c.0.s8 %v670
      %v672 = vlaneseq
      %v673 = vshrl.u32 %v672, 7
      %v674 = vsub.s32 %v671, %v673
      %v675 = vrot.slane %v661, %v674
      %v676 = vcombine.low %v227, %v231
      %v677 = vcombine.high %v227, %v231
      %v679 = vunpack.c.l.s4 1983009808
      %v680 = vunpack.c.0.s8 %v679
      %v681 = vlaneseq
      %v682 = vshrl.u32 %v681, 7
      %v683 = vsub.s32 %v680, %v682
      %v684 = vrot.slane %v676, %v683
      %v686 = vunpack.c.l.s4 1983009808
      %v687 = vunpack.c.0.s8 %v686
      %v688 = vlaneseq
      %v689 = vshrl.u32 %v688, 7
      %v690 = vsub.s32 %v687, %v689
      %v691 = vrot.slane %v677, %v690
      %v692 = vcombine.low %v229, %v233
      %v693 = vcombine.high %v229, %v233
      %v695 = vunpack.c.l.s4 1983009808
      %v696 = vunpack.c.0.s8 %v695
      %v697 = vlaneseq
      %v698 = vshrl.u32 %v697, 7
      %v699 = vsub.s32 %v696, %v698
      %v700 = vrot.slane %v692, %v699
      %v702 = vunpack.c.l.s4 1983009808
      %v703 = vunpack.c.0.s8 %v702
      %v704 = vlaneseq
      %v705 = vshrl.u32 %v704, 7
      %v706 = vsub.s32 %v703, %v705
      %v707 = vrot.slane %v693, %v706
      %v708 = vcombine.low %v652, %v668
      %v709 = vcombine.high %v652, %v668
      %v711 = vunpack.c.l.s4 1934713408
      %v712 = vunpack.c.0.s8 %v711
      %v713 = vlaneseq
      %v714 = vshrl.u32 %v713, 7
      %v715 = vsub.s32 %v712, %v714
      %v716 = vrot.slane %v708, %v715
      %v718 = vunpack.c.l.s4 1934713408
      %v719 = vunpack.c.0.s8 %v718
      %v720 = vlaneseq
      %v721 = vshrl.u32 %v720, 7
      %v722 = vsub.s32 %v719, %v721
      %v723 = vrot.slane %v709, %v722
      %v724 = vcombine.low %v659, %v675
      %v725 = vcombine.high %v659, %v675
      %v727 = vunpack.c.l.s4 1934713408
      %v728 = vunpack.c.0.s8 %v727
      %v729 = vlaneseq
      %v730 = vshrl.u32 %v729, 7
      %v731 = vsub.s32 %v728, %v730
      %v732 = vrot.slane %v724, %v731
      %v734 = vunpack.c.l.s4 1934713408
      %v735 = vunpack.c.0.s8 %v734
      %v736 = vlaneseq
      %v737 = vshrl.u32 %v736, 7
      %v738 = vsub.s32 %v735, %v737
      %v739 = vrot.slane %v725, %v738
      %v740 = vcombine.low %v684, %v700
      %v741 = vcombine.high %v684, %v700
      %v743 = vunpack.c.l.s4 1934713408
      %v744 = vunpack.c.0.s8 %v743
      %v745 = vlaneseq
      %v746 = vshrl.u32 %v745, 7
      %v747 = vsub.s32 %v744, %v746
      %v748 = vrot.slane %v740, %v747
      %v750 = vunpack.c.l.s4 1934713408
      %v751 = vunpack.c.0.s8 %v750
      %v752 = vlaneseq
      %v753 = vshrl.u32 %v752, 7
      %v754 = vsub.s32 %v751, %v753
      %v755 = vrot.slane %v741, %v754
      %v756 = vcombine.low %v691, %v707
      %v757 = vcombine.high %v691, %v707
      %v759 = vunpack.c.l.s4 1934713408
      %v760 = vunpack.c.0.s8 %v759
      %v761 = vlaneseq
      %v762 = vshrl.u32 %v761, 7
      %v763 = vsub.s32 %v760, %v762
      %v764 = vrot.slane %v756, %v763
      %v766 = vunpack.c.l.s4 1934713408
      %v767 = vunpack.c.0.s8 %v766
      %v768 = vlaneseq
      %v769 = vshrl.u32 %v768, 7
      %v770 = vsub.s32 %v767, %v769
      %v771 = vrot.slane %v757, %v770
      %v772 = vcombine.low %v716, %v748
      %v773 = vcombine.high %v716, %v748
      %v774 = vcombine.low %v723, %v755
      %v775 = vcombine.high %v723, %v755
      %v776 = vcombine.low %v732, %v764
      %v777 = vcombine.high %v732, %v764
      %v778 = vcombine.low %v739, %v771
      %v779 = vcombine.high %v739, %v771
      %782 = vrot.lane.b32.xlu0 %v365, 4
      %v783 = vpop.permute.xlu0 %782
      %784 = vrot.lane.b32.xlu0 %v501, 4
      %v785 = vpop.permute.xlu0 %784
      %790 = vrot.lane.b32.xlu0 %v366, 8
      %v791 = vpop.permute.xlu0 %790
      %792 = vrot.lane.b32.xlu0 %v502, 8
      %v793 = vpop.permute.xlu0 %792
      %798 = vrot.lane.b32.xlu0 %v367, 12
      %v799 = vpop.permute.xlu0 %798
      %800 = vrot.lane.b32.xlu0 %v503, 12
      %v801 = vpop.permute.xlu0 %800
      %806 = vrot.lane.b32.xlu0 %v368, 16
      %v807 = vpop.permute.xlu0 %806
      %808 = vrot.lane.b32.xlu0 %v504, 16
      %v809 = vpop.permute.xlu0 %808
      %814 = vrot.lane.b32.xlu0 %v369, 20
      %v815 = vpop.permute.xlu0 %814
      %816 = vrot.lane.b32.xlu0 %v505, 20
      %v817 = vpop.permute.xlu0 %816
      %822 = vrot.lane.b32.xlu0 %v370, 24
      %v823 = vpop.permute.xlu0 %822
      %824 = vrot.lane.b32.xlu0 %v506, 24
      %v825 = vpop.permute.xlu0 %824
      %830 = vrot.lane.b32.xlu0 %v371, 28
      %v831 = vpop.permute.xlu0 %830
      %832 = vrot.lane.b32.xlu0 %v507, 28
      %v833 = vpop.permute.xlu0 %832
      %838 = vrot.lane.b32.xlu0 %v636, 32
      %v839 = vpop.permute.xlu0 %838
      %840 = vrot.lane.b32.xlu0 %v772, 32
      %v841 = vpop.permute.xlu0 %840
      %846 = vrot.lane.b32.xlu0 %v637, 36
      %v847 = vpop.permute.xlu0 %846
      %848 = vrot.lane.b32.xlu0 %v773, 36
      %v849 = vpop.permute.xlu0 %848
      %854 = vrot.lane.b32.xlu0 %v638, 40
      %v855 = vpop.permute.xlu0 %854
      %856 = vrot.lane.b32.xlu0 %v774, 40
      %v857 = vpop.permute.xlu0 %856
      %862 = vrot.lane.b32.xlu0 %v639, 44
      %v863 = vpop.permute.xlu0 %862
      %864 = vrot.lane.b32.xlu0 %v775, 44
      %v865 = vpop.permute.xlu0 %864
      %870 = vrot.lane.b32.xlu0 %v640, 48
      %v871 = vpop.permute.xlu0 %870
      %872 = vrot.lane.b32.xlu0 %v776, 48
      %v873 = vpop.permute.xlu0 %872
      %878 = vrot.lane.b32.xlu0 %v641, 52
      %v879 = vpop.permute.xlu0 %878
      %880 = vrot.lane.b32.xlu0 %v777, 52
      %v881 = vpop.permute.xlu0 %880
      %886 = vrot.lane.b32.xlu0 %v642, 56
      %v887 = vpop.permute.xlu0 %886
      %888 = vrot.lane.b32.xlu0 %v778, 56
      %v889 = vpop.permute.xlu0 %888
      %894 = vrot.lane.b32.xlu0 %v643, 60
      %v895 = vpop.permute.xlu0 %894
      %896 = vrot.lane.b32.xlu0 %v779, 60
      %v897 = vpop.permute.xlu0 %896
      %vm900 = vcmask 31744
      %v901 = vsel %vm900, %v364, %v783
      %v902 = vsel %vm900, %v500, %v785
      %vm903 = vcmask 64512
      %v904 = vsel %vm903, %v901, %v791
      %v905 = vsel %vm903, %v902, %v793
      %vm906 = vcmask 97280
      %v907 = vsel %vm906, %v904, %v799
      %v908 = vsel %vm906, %v905, %v801
      %vm909 = vcmask 130048
      %v910 = vsel %vm909, %v907, %v807
      %v911 = vsel %vm909, %v908, %v809
      %vm912 = vcmask 162816
      %v913 = vsel %vm912, %v910, %v815
      %v914 = vsel %vm912, %v911, %v817
      %vm915 = vcmask 195584
      %v916 = vsel %vm915, %v913, %v823
      %v917 = vsel %vm915, %v914, %v825
      %vm918 = vcmask 228352
      %v919 = vsel %vm918, %v916, %v831
      %v920 = vsel %vm918, %v917, %v833
      %vm921 = vcmask 261120
      %v922 = vsel %vm921, %v919, %v839
      %v923 = vsel %vm921, %v920, %v841
      %vm924 = vcmask 293888
      %v925 = vsel %vm924, %v922, %v847
      %v926 = vsel %vm924, %v923, %v849
      %vm927 = vcmask 326656
      %v928 = vsel %vm927, %v925, %v855
      %v929 = vsel %vm927, %v926, %v857
      %vm930 = vcmask 359424
      %v931 = vsel %vm930, %v928, %v863
      %v932 = vsel %vm930, %v929, %v865
      %vm933 = vcmask 392192
      %v934 = vsel %vm933, %v931, %v871
      %v935 = vsel %vm933, %v932, %v873
      %vm936 = vcmask 424960
      %v937 = vsel %vm936, %v934, %v879
      %v938 = vsel %vm936, %v935, %v881
      %vm939 = vcmask 457728
      %v940 = vsel %vm939, %v937, %v887
      %v941 = vsel %vm939, %v938, %v889
      %vm942 = vcmask 490496
      %v943 = vsel %vm942, %v940, %v895
      %v944 = vsel %vm942, %v941, %v897
      %v946 = vsel %vm909, %v234, 0
      %v949 = vsel %vm909, %v235, 0
      %951 = vmatprep.subr.mxu0 0.0
      %952 = vmatpush1.msra.mxu0 %v943
      %953 = vmatprep.subr.mxu0 0.0
      %954 = vmatpush1.msra.mxu0 %v944
      %955 = vmatprep.subr.mxu0 0.0
      %956 = vmatpush1.msra.mxu0 0.0
      %957 = vmatprep.subr.mxu0 0.0
      %958 = vmatpush1.msra.mxu0 0.0
      %959 = vmatprep.subr.mxu0 0.0
      %960 = vmatpush1.msra.mxu0 0.0
      %961 = vmatprep.subr.mxu0 0.0
      %962 = vmatpush1.msra.mxu0 0.0
      %963 = vmatprep.subr.mxu0 0.0
      %964 = vmatpush1.msra.mxu0 0.0
      %965 = vmatprep.subr.mxu0 0.0
      %966 = vmatpush1.msra.mxu0 0.0
      %967 = vmatprep.subr.mxu0 0.0
      %968 = vmatpush1.msra.mxu0 0.0
      %969 = vmatprep.subr.mxu0 0.0
      %970 = vmatpush1.msra.mxu0 0.0
      %971 = vmatprep.subr.mxu0 0.0
      %972 = vmatpush1.msra.mxu0 0.0
      %973 = vmatprep.subr.mxu0 0.0
      %974 = vmatpush1.msra.mxu0 0.0
      %975 = vmatprep.subr.mxu0 0.0
      %976 = vmatpush1.msra.mxu0 0.0
      %977 = vmatprep.subr.mxu0 0.0
      %978 = vmatpush1.msra.mxu0 0.0
      %979 = vmatprep.subr.mxu0 0.0
      %980 = vmatpush1.msra.mxu0 0.0
      %981 = vmatprep.subr.mxu0 0.0
      %982 = vmatpush1.msra.mxu0 0.0
      %983 = vmatprep.subr.mxu0 0.0
      %984 = vmatpush1.msra.mxu0 0.0
      %985 = vmatprep.subr.mxu0 0.0
      %986 = vmatpush1.msra.mxu0 0.0
      %987 = vmatprep.subr.mxu0 0.0
      %988 = vmatpush1.msra.mxu0 0.0
      %989 = vmatprep.subr.mxu0 0.0
      %990 = vmatpush1.msra.mxu0 0.0
      %991 = vmatprep.subr.mxu0 0.0
      %992 = vmatpush1.msra.mxu0 0.0
      %993 = vmatprep.subr.mxu0 0.0
      %994 = vmatpush1.msra.mxu0 0.0
      %995 = vmatprep.subr.mxu0 0.0
      %996 = vmatpush1.msra.mxu0 0.0
      %997 = vmatprep.subr.mxu0 0.0
      %998 = vmatpush1.msra.mxu0 0.0
      %999 = vmatprep.subr.mxu0 0.0
      %1000 = vmatpush1.msra.mxu0 0.0
      %1001 = vmatprep.subr.mxu0 0.0
      %1002 = vmatpush1.msra.mxu0 0.0
      %1003 = vmatprep.subr.mxu0 0.0
      %1004 = vmatpush1.msra.mxu0 0.0
      %1005 = vmatprep.subr.mxu0 0.0
      %1006 = vmatpush1.msra.mxu0 0.0
      %1007 = vmatprep.subr.mxu0 0.0
      %1008 = vmatpush1.msra.mxu0 0.0
      %1009 = vmatprep.subr.mxu0 0.0
      %1010 = vmatpush1.msra.mxu0 0.0
      %1011 = vmatprep.subr.mxu0 0.0
      %1012 = vmatpush1.msra.mxu0 0.0
      %1013 = vmatprep.subr.mxu0 0.0
      %1014 = vmatpush1.msra.mxu0 0.0
      %1015 = vmatprep.mubr.f32.mxu0 0.0
      %1016 = vmatmul.mubr.f32.gmra.mrb[0].mxu0 %v946
      %v1017 = vpop.f32.mrb[0].mxu0
      %v1018 = vadd.f32 0.0, %v1017
      %v1019 = vpop.f32.mrb[0].mxu0
      %1020 = vmatprep.mubr.f32.mxu0 0.0
      %1021 = vmatmul.mubr.f32.gmra.mrb[0].mxu0 %v949
      %v1022 = vpop.f32.mrb[0].mxu0
      %v1023 = vadd.f32 0.0, %v1022
      %v1024 = vpop.f32.mrb[0].mxu0
      %1025 = vdwg.mxu0
      %1028 = vrot.lane.b32.xlu0 %v1018, 124
      %v1029 = vpop.permute.xlu0 %1028
      %1030 = vrot.lane.b32.xlu0 %v1023, 124
      %v1031 = vpop.permute.xlu0 %1030
      %1034 = vrot.lane.b32.xlu0 %v1018, 120
      %v1035 = vpop.permute.xlu0 %1034
      %1036 = vrot.lane.b32.xlu0 %v1023, 120
      %v1037 = vpop.permute.xlu0 %1036
      %1040 = vrot.lane.b32.xlu0 %v1018, 116
      %v1041 = vpop.permute.xlu0 %1040
      %1042 = vrot.lane.b32.xlu0 %v1023, 116
      %v1043 = vpop.permute.xlu0 %1042
      %1046 = vrot.lane.b32.xlu0 %v1018, 112
      %v1047 = vpop.permute.xlu0 %1046
      %1048 = vrot.lane.b32.xlu0 %v1023, 112
      %v1049 = vpop.permute.xlu0 %1048
      %1052 = vrot.lane.b32.xlu0 %v1018, 108
      %v1053 = vpop.permute.xlu0 %1052
      %1054 = vrot.lane.b32.xlu0 %v1023, 108
      %v1055 = vpop.permute.xlu0 %1054
      %1058 = vrot.lane.b32.xlu0 %v1018, 104
      %v1059 = vpop.permute.xlu0 %1058
      %1060 = vrot.lane.b32.xlu0 %v1023, 104
      %v1061 = vpop.permute.xlu0 %1060
      %1064 = vrot.lane.b32.xlu0 %v1018, 100
      %v1065 = vpop.permute.xlu0 %1064
      %1066 = vrot.lane.b32.xlu0 %v1023, 100
      %v1067 = vpop.permute.xlu0 %1066
      %1070 = vrot.lane.b32.xlu0 %v1018, 96
      %v1071 = vpop.permute.xlu0 %1070
      %1072 = vrot.lane.b32.xlu0 %v1023, 96
      %v1073 = vpop.permute.xlu0 %1072
      %1076 = vrot.lane.b32.xlu0 %v1018, 92
      %v1077 = vpop.permute.xlu0 %1076
      %1078 = vrot.lane.b32.xlu0 %v1023, 92
      %v1079 = vpop.permute.xlu0 %1078
      %1082 = vrot.lane.b32.xlu0 %v1018, 88
      %v1083 = vpop.permute.xlu0 %1082
      %1084 = vrot.lane.b32.xlu0 %v1023, 88
      %v1085 = vpop.permute.xlu0 %1084
      %1088 = vrot.lane.b32.xlu0 %v1018, 84
      %v1089 = vpop.permute.xlu0 %1088
      %1090 = vrot.lane.b32.xlu0 %v1023, 84
      %v1091 = vpop.permute.xlu0 %1090
      %1094 = vrot.lane.b32.xlu0 %v1018, 80
      %v1095 = vpop.permute.xlu0 %1094
      %1096 = vrot.lane.b32.xlu0 %v1023, 80
      %v1097 = vpop.permute.xlu0 %1096
      %1100 = vrot.lane.b32.xlu0 %v1018, 76
      %v1101 = vpop.permute.xlu0 %1100
      %1102 = vrot.lane.b32.xlu0 %v1023, 76
      %v1103 = vpop.permute.xlu0 %1102
      %1106 = vrot.lane.b32.xlu0 %v1018, 72
      %v1107 = vpop.permute.xlu0 %1106
      %1108 = vrot.lane.b32.xlu0 %v1023, 72
      %v1109 = vpop.permute.xlu0 %1108
      %1112 = vrot.lane.b32.xlu0 %v1018, 68
      %v1113 = vpop.permute.xlu0 %1112
      %1114 = vrot.lane.b32.xlu0 %v1023, 68
      %v1115 = vpop.permute.xlu0 %1114
      %v1118 = vcombine.low %v1018, %v1035
      %v1119 = vcombine.high %v1018, %v1035
      %v1121 = vunpack.c.l.s4 1983009808
      %v1122 = vunpack.c.0.s8 %v1121
      %v1123 = vlaneseq
      %v1124 = vshrl.u32 %v1123, 7
      %v1125 = vsub.s32 %v1122, %v1124
      %v1126 = vrot.slane %v1118, %v1125
      %v1128 = vunpack.c.l.s4 1983009808
      %v1129 = vunpack.c.0.s8 %v1128
      %v1130 = vlaneseq
      %v1131 = vshrl.u32 %v1130, 7
      %v1132 = vsub.s32 %v1129, %v1131
      %v1133 = vrot.slane %v1119, %v1132
      %v1134 = vcombine.low %v1029, %v1041
      %v1135 = vcombine.high %v1029, %v1041
      %v1137 = vunpack.c.l.s4 1983009808
      %v1138 = vunpack.c.0.s8 %v1137
      %v1139 = vlaneseq
      %v1140 = vshrl.u32 %v1139, 7
      %v1141 = vsub.s32 %v1138, %v1140
      %v1142 = vrot.slane %v1134, %v1141
      %v1144 = vunpack.c.l.s4 1983009808
      %v1145 = vunpack.c.0.s8 %v1144
      %v1146 = vlaneseq
      %v1147 = vshrl.u32 %v1146, 7
      %v1148 = vsub.s32 %v1145, %v1147
      %v1149 = vrot.slane %v1135, %v1148
      %v1150 = vcombine.low %v1047, %v1059
      %v1151 = vcombine.high %v1047, %v1059
      %v1153 = vunpack.c.l.s4 1983009808
      %v1154 = vunpack.c.0.s8 %v1153
      %v1155 = vlaneseq
      %v1156 = vshrl.u32 %v1155, 7
      %v1157 = vsub.s32 %v1154, %v1156
      %v1158 = vrot.slane %v1150, %v1157
      %v1160 = vunpack.c.l.s4 1983009808
      %v1161 = vunpack.c.0.s8 %v1160
      %v1162 = vlaneseq
      %v1163 = vshrl.u32 %v1162, 7
      %v1164 = vsub.s32 %v1161, %v1163
      %v1165 = vrot.slane %v1151, %v1164
      %v1166 = vcombine.low %v1053, %v1065
      %v1167 = vcombine.high %v1053, %v1065
      %v1169 = vunpack.c.l.s4 1983009808
      %v1170 = vunpack.c.0.s8 %v1169
      %v1171 = vlaneseq
      %v1172 = vshrl.u32 %v1171, 7
      %v1173 = vsub.s32 %v1170, %v1172
      %v1174 = vrot.slane %v1166, %v1173
      %v1176 = vunpack.c.l.s4 1983009808
      %v1177 = vunpack.c.0.s8 %v1176
      %v1178 = vlaneseq
      %v1179 = vshrl.u32 %v1178, 7
      %v1180 = vsub.s32 %v1177, %v1179
      %v1181 = vrot.slane %v1167, %v1180
      %v1182 = vcombine.low %v1126, %v1142
      %v1183 = vcombine.high %v1126, %v1142
      %v1185 = vunpack.c.l.s4 1934713408
      %v1186 = vunpack.c.0.s8 %v1185
      %v1187 = vlaneseq
      %v1188 = vshrl.u32 %v1187, 7
      %v1189 = vsub.s32 %v1186, %v1188
      %v1190 = vrot.slane %v1182, %v1189
      %v1192 = vunpack.c.l.s4 1934713408
      %v1193 = vunpack.c.0.s8 %v1192
      %v1194 = vlaneseq
      %v1195 = vshrl.u32 %v1194, 7
      %v1196 = vsub.s32 %v1193, %v1195
      %v1197 = vrot.slane %v1183, %v1196
      %v1198 = vcombine.low %v1133, %v1149
      %v1199 = vcombine.high %v1133, %v1149
      %v1201 = vunpack.c.l.s4 1934713408
      %v1202 = vunpack.c.0.s8 %v1201
      %v1203 = vlaneseq
      %v1204 = vshrl.u32 %v1203, 7
      %v1205 = vsub.s32 %v1202, %v1204
      %v1206 = vrot.slane %v1198, %v1205
      %v1208 = vunpack.c.l.s4 1934713408
      %v1209 = vunpack.c.0.s8 %v1208
      %v1210 = vlaneseq
      %v1211 = vshrl.u32 %v1210, 7
      %v1212 = vsub.s32 %v1209, %v1211
      %v1213 = vrot.slane %v1199, %v1212
      %v1214 = vcombine.low %v1158, %v1174
      %v1215 = vcombine.high %v1158, %v1174
      %v1217 = vunpack.c.l.s4 1934713408
      %v1218 = vunpack.c.0.s8 %v1217
      %v1219 = vlaneseq
      %v1220 = vshrl.u32 %v1219, 7
      %v1221 = vsub.s32 %v1218, %v1220
      %v1222 = vrot.slane %v1214, %v1221
      %v1224 = vunpack.c.l.s4 1934713408
      %v1225 = vunpack.c.0.s8 %v1224
      %v1226 = vlaneseq
      %v1227 = vshrl.u32 %v1226, 7
      %v1228 = vsub.s32 %v1225, %v1227
      %v1229 = vrot.slane %v1215, %v1228
      %v1230 = vcombine.low %v1165, %v1181
      %v1231 = vcombine.high %v1165, %v1181
      %v1233 = vunpack.c.l.s4 1934713408
      %v1234 = vunpack.c.0.s8 %v1233
      %v1235 = vlaneseq
      %v1236 = vshrl.u32 %v1235, 7
      %v1237 = vsub.s32 %v1234, %v1236
      %v1238 = vrot.slane %v1230, %v1237
      %v1240 = vunpack.c.l.s4 1934713408
      %v1241 = vunpack.c.0.s8 %v1240
      %v1242 = vlaneseq
      %v1243 = vshrl.u32 %v1242, 7
      %v1244 = vsub.s32 %v1241, %v1243
      %v1245 = vrot.slane %v1231, %v1244
      %v1246 = vcombine.low %v1190, %v1222
      %v1247 = vcombine.high %v1190, %v1222
      %v1248 = vcombine.low %v1197, %v1229
      %v1249 = vcombine.high %v1197, %v1229
      %v1250 = vcombine.low %v1206, %v1238
      %v1251 = vcombine.high %v1206, %v1238
      %v1252 = vcombine.low %v1213, %v1245
      %v1253 = vcombine.high %v1213, %v1245
      %v1254 = vcombine.low %v1071, %v1083
      %v1255 = vcombine.high %v1071, %v1083
      %v1257 = vunpack.c.l.s4 1983009808
      %v1258 = vunpack.c.0.s8 %v1257
      %v1259 = vlaneseq
      %v1260 = vshrl.u32 %v1259, 7
      %v1261 = vsub.s32 %v1258, %v1260
      %v1262 = vrot.slane %v1254, %v1261
      %v1264 = vunpack.c.l.s4 1983009808
      %v1265 = vunpack.c.0.s8 %v1264
      %v1266 = vlaneseq
      %v1267 = vshrl.u32 %v1266, 7
      %v1268 = vsub.s32 %v1265, %v1267
      %v1269 = vrot.slane %v1255, %v1268
      %v1270 = vcombine.low %v1077, %v1089
      %v1271 = vcombine.high %v1077, %v1089
      %v1273 = vunpack.c.l.s4 1983009808
      %v1274 = vunpack.c.0.s8 %v1273
      %v1275 = vlaneseq
      %v1276 = vshrl.u32 %v1275, 7
      %v1277 = vsub.s32 %v1274, %v1276
      %v1278 = vrot.slane %v1270, %v1277
      %v1280 = vunpack.c.l.s4 1983009808
      %v1281 = vunpack.c.0.s8 %v1280
      %v1282 = vlaneseq
      %v1283 = vshrl.u32 %v1282, 7
      %v1284 = vsub.s32 %v1281, %v1283
      %v1285 = vrot.slane %v1271, %v1284
      %v1286 = vcombine.low %v1095, %v1107
      %v1287 = vcombine.high %v1095, %v1107
      %v1289 = vunpack.c.l.s4 1983009808
      %v1290 = vunpack.c.0.s8 %v1289
      %v1291 = vlaneseq
      %v1292 = vshrl.u32 %v1291, 7
      %v1293 = vsub.s32 %v1290, %v1292
      %v1294 = vrot.slane %v1286, %v1293
      %v1296 = vunpack.c.l.s4 1983009808
      %v1297 = vunpack.c.0.s8 %v1296
      %v1298 = vlaneseq
      %v1299 = vshrl.u32 %v1298, 7
      %v1300 = vsub.s32 %v1297, %v1299
      %v1301 = vrot.slane %v1287, %v1300
      %v1302 = vcombine.low %v1101, %v1113
      %v1303 = vcombine.high %v1101, %v1113
      %v1305 = vunpack.c.l.s4 1983009808
      %v1306 = vunpack.c.0.s8 %v1305
      %v1307 = vlaneseq
      %v1308 = vshrl.u32 %v1307, 7
      %v1309 = vsub.s32 %v1306, %v1308
      %v1310 = vrot.slane %v1302, %v1309
      %v1312 = vunpack.c.l.s4 1983009808
      %v1313 = vunpack.c.0.s8 %v1312
      %v1314 = vlaneseq
      %v1315 = vshrl.u32 %v1314, 7
      %v1316 = vsub.s32 %v1313, %v1315
      %v1317 = vrot.slane %v1303, %v1316
      %v1318 = vcombine.low %v1262, %v1278
      %v1319 = vcombine.high %v1262, %v1278
      %v1321 = vunpack.c.l.s4 1934713408
      %v1322 = vunpack.c.0.s8 %v1321
      %v1323 = vlaneseq
      %v1324 = vshrl.u32 %v1323, 7
      %v1325 = vsub.s32 %v1322, %v1324
      %v1326 = vrot.slane %v1318, %v1325
      %v1328 = vunpack.c.l.s4 1934713408
      %v1329 = vunpack.c.0.s8 %v1328
      %v1330 = vlaneseq
      %v1331 = vshrl.u32 %v1330, 7
      %v1332 = vsub.s32 %v1329, %v1331
      %v1333 = vrot.slane %v1319, %v1332
      %v1334 = vcombine.low %v1269, %v1285
      %v1335 = vcombine.high %v1269, %v1285
      %v1337 = vunpack.c.l.s4 1934713408
      %v1338 = vunpack.c.0.s8 %v1337
      %v1339 = vlaneseq
      %v1340 = vshrl.u32 %v1339, 7
      %v1341 = vsub.s32 %v1338, %v1340
      %v1342 = vrot.slane %v1334, %v1341
      %v1344 = vunpack.c.l.s4 1934713408
      %v1345 = vunpack.c.0.s8 %v1344
      %v1346 = vlaneseq
      %v1347 = vshrl.u32 %v1346, 7
      %v1348 = vsub.s32 %v1345, %v1347
      %v1349 = vrot.slane %v1335, %v1348
      %v1350 = vcombine.low %v1294, %v1310
      %v1351 = vcombine.high %v1294, %v1310
      %v1353 = vunpack.c.l.s4 1934713408
      %v1354 = vunpack.c.0.s8 %v1353
      %v1355 = vlaneseq
      %v1356 = vshrl.u32 %v1355, 7
      %v1357 = vsub.s32 %v1354, %v1356
      %v1358 = vrot.slane %v1350, %v1357
      %v1360 = vunpack.c.l.s4 1934713408
      %v1361 = vunpack.c.0.s8 %v1360
      %v1362 = vlaneseq
      %v1363 = vshrl.u32 %v1362, 7
      %v1364 = vsub.s32 %v1361, %v1363
      %v1365 = vrot.slane %v1351, %v1364
      %v1366 = vcombine.low %v1301, %v1317
      %v1367 = vcombine.high %v1301, %v1317
      %v1369 = vunpack.c.l.s4 1934713408
      %v1370 = vunpack.c.0.s8 %v1369
      %v1371 = vlaneseq
      %v1372 = vshrl.u32 %v1371, 7
      %v1373 = vsub.s32 %v1370, %v1372
      %v1374 = vrot.slane %v1366, %v1373
      %v1376 = vunpack.c.l.s4 1934713408
      %v1377 = vunpack.c.0.s8 %v1376
      %v1378 = vlaneseq
      %v1379 = vshrl.u32 %v1378, 7
      %v1380 = vsub.s32 %v1377, %v1379
      %v1381 = vrot.slane %v1367, %v1380
      %v1382 = vcombine.low %v1326, %v1358
      %v1383 = vcombine.high %v1326, %v1358
      %v1384 = vcombine.low %v1333, %v1365
      %v1385 = vcombine.high %v1333, %v1365
      %v1386 = vcombine.low %v1342, %v1374
      %v1387 = vcombine.high %v1342, %v1374
      %v1388 = vcombine.low %v1349, %v1381
      %v1389 = vcombine.high %v1349, %v1381
      %v1390 = vcombine.low %v1023, %v1037
      %v1391 = vcombine.high %v1023, %v1037
      %v1393 = vunpack.c.l.s4 1983009808
      %v1394 = vunpack.c.0.s8 %v1393
      %v1395 = vlaneseq
      %v1396 = vshrl.u32 %v1395, 7
      %v1397 = vsub.s32 %v1394, %v1396
      %v1398 = vrot.slane %v1390, %v1397
      %v1400 = vunpack.c.l.s4 1983009808
      %v1401 = vunpack.c.0.s8 %v1400
      %v1402 = vlaneseq
      %v1403 = vshrl.u32 %v1402, 7
      %v1404 = vsub.s32 %v1401, %v1403
      %v1405 = vrot.slane %v1391, %v1404
      %v1406 = vcombine.low %v1031, %v1043
      %v1407 = vcombine.high %v1031, %v1043
      %v1409 = vunpack.c.l.s4 1983009808
      %v1410 = vunpack.c.0.s8 %v1409
      %v1411 = vlaneseq
      %v1412 = vshrl.u32 %v1411, 7
      %v1413 = vsub.s32 %v1410, %v1412
      %v1414 = vrot.slane %v1406, %v1413
      %v1416 = vunpack.c.l.s4 1983009808
      %v1417 = vunpack.c.0.s8 %v1416
      %v1418 = vlaneseq
      %v1419 = vshrl.u32 %v1418, 7
      %v1420 = vsub.s32 %v1417, %v1419
      %v1421 = vrot.slane %v1407, %v1420
      %v1422 = vcombine.low %v1049, %v1061
      %v1423 = vcombine.high %v1049, %v1061
      %v1425 = vunpack.c.l.s4 1983009808
      %v1426 = vunpack.c.0.s8 %v1425
      %v1427 = vlaneseq
      %v1428 = vshrl.u32 %v1427, 7
      %v1429 = vsub.s32 %v1426, %v1428
      %v1430 = vrot.slane %v1422, %v1429
      %v1432 = vunpack.c.l.s4 1983009808
      %v1433 = vunpack.c.0.s8 %v1432
      %v1434 = vlaneseq
      %v1435 = vshrl.u32 %v1434, 7
      %v1436 = vsub.s32 %v1433, %v1435
      %v1437 = vrot.slane %v1423, %v1436
      %v1438 = vcombine.low %v1055, %v1067
      %v1439 = vcombine.high %v1055, %v1067
      %v1441 = vunpack.c.l.s4 1983009808
      %v1442 = vunpack.c.0.s8 %v1441
      %v1443 = vlaneseq
      %v1444 = vshrl.u32 %v1443, 7
      %v1445 = vsub.s32 %v1442, %v1444
      %v1446 = vrot.slane %v1438, %v1445
      %v1448 = vunpack.c.l.s4 1983009808
      %v1449 = vunpack.c.0.s8 %v1448
      %v1450 = vlaneseq
      %v1451 = vshrl.u32 %v1450, 7
      %v1452 = vsub.s32 %v1449, %v1451
      %v1453 = vrot.slane %v1439, %v1452
      %v1454 = vcombine.low %v1398, %v1414
      %v1455 = vcombine.high %v1398, %v1414
      %v1457 = vunpack.c.l.s4 1934713408
      %v1458 = vunpack.c.0.s8 %v1457
      %v1459 = vlaneseq
      %v1460 = vshrl.u32 %v1459, 7
      %v1461 = vsub.s32 %v1458, %v1460
      %v1462 = vrot.slane %v1454, %v1461
      %v1464 = vunpack.c.l.s4 1934713408
      %v1465 = vunpack.c.0.s8 %v1464
      %v1466 = vlaneseq
      %v1467 = vshrl.u32 %v1466, 7
      %v1468 = vsub.s32 %v1465, %v1467
      %v1469 = vrot.slane %v1455, %v1468
      %v1470 = vcombine.low %v1405, %v1421
      %v1471 = vcombine.high %v1405, %v1421
      %v1473 = vunpack.c.l.s4 1934713408
      %v1474 = vunpack.c.0.s8 %v1473
      %v1475 = vlaneseq
      %v1476 = vshrl.u32 %v1475, 7
      %v1477 = vsub.s32 %v1474, %v1476
      %v1478 = vrot.slane %v1470, %v1477
      %v1480 = vunpack.c.l.s4 1934713408
      %v1481 = vunpack.c.0.s8 %v1480
      %v1482 = vlaneseq
      %v1483 = vshrl.u32 %v1482, 7
      %v1484 = vsub.s32 %v1481, %v1483
      %v1485 = vrot.slane %v1471, %v1484
      %v1486 = vcombine.low %v1430, %v1446
      %v1487 = vcombine.high %v1430, %v1446
      %v1489 = vunpack.c.l.s4 1934713408
      %v1490 = vunpack.c.0.s8 %v1489
      %v1491 = vlaneseq
      %v1492 = vshrl.u32 %v1491, 7
      %v1493 = vsub.s32 %v1490, %v1492
      %v1494 = vrot.slane %v1486, %v1493
      %v1496 = vunpack.c.l.s4 1934713408
      %v1497 = vunpack.c.0.s8 %v1496
      %v1498 = vlaneseq
      %v1499 = vshrl.u32 %v1498, 7
      %v1500 = vsub.s32 %v1497, %v1499
      %v1501 = vrot.slane %v1487, %v1500
      %v1502 = vcombine.low %v1437, %v1453
      %v1503 = vcombine.high %v1437, %v1453
      %v1505 = vunpack.c.l.s4 1934713408
      %v1506 = vunpack.c.0.s8 %v1505
      %v1507 = vlaneseq
      %v1508 = vshrl.u32 %v1507, 7
      %v1509 = vsub.s32 %v1506, %v1508
      %v1510 = vrot.slane %v1502, %v1509
      %v1512 = vunpack.c.l.s4 1934713408
      %v1513 = vunpack.c.0.s8 %v1512
      %v1514 = vlaneseq
      %v1515 = vshrl.u32 %v1514, 7
      %v1516 = vsub.s32 %v1513, %v1515
      %v1517 = vrot.slane %v1503, %v1516
      %v1518 = vcombine.low %v1462, %v1494
      %v1519 = vcombine.high %v1462, %v1494
      %v1520 = vcombine.low %v1469, %v1501
      %v1521 = vcombine.high %v1469, %v1501
      %v1522 = vcombine.low %v1478, %v1510
      %v1523 = vcombine.high %v1478, %v1510
      %v1524 = vcombine.low %v1485, %v1517
      %v1525 = vcombine.high %v1485, %v1517
      %v1526 = vcombine.low %v1073, %v1085
      %v1527 = vcombine.high %v1073, %v1085
      %v1529 = vunpack.c.l.s4 1983009808
      %v1530 = vunpack.c.0.s8 %v1529
      %v1531 = vlaneseq
      %v1532 = vshrl.u32 %v1531, 7
      %v1533 = vsub.s32 %v1530, %v1532
      %v1534 = vrot.slane %v1526, %v1533
      %v1536 = vunpack.c.l.s4 1983009808
      %v1537 = vunpack.c.0.s8 %v1536
      %v1538 = vlaneseq
      %v1539 = vshrl.u32 %v1538, 7
      %v1540 = vsub.s32 %v1537, %v1539
      %v1541 = vrot.slane %v1527, %v1540
      %v1542 = vcombine.low %v1079, %v1091
      %v1543 = vcombine.high %v1079, %v1091
      %v1545 = vunpack.c.l.s4 1983009808
      %v1546 = vunpack.c.0.s8 %v1545
      %v1547 = vlaneseq
      %v1548 = vshrl.u32 %v1547, 7
      %v1549 = vsub.s32 %v1546, %v1548
      %v1550 = vrot.slane %v1542, %v1549
      %v1552 = vunpack.c.l.s4 1983009808
      %v1553 = vunpack.c.0.s8 %v1552
      %v1554 = vlaneseq
      %v1555 = vshrl.u32 %v1554, 7
      %v1556 = vsub.s32 %v1553, %v1555
      %v1557 = vrot.slane %v1543, %v1556
      %v1558 = vcombine.low %v1097, %v1109
      %v1559 = vcombine.high %v1097, %v1109
      %v1561 = vunpack.c.l.s4 1983009808
      %v1562 = vunpack.c.0.s8 %v1561
      %v1563 = vlaneseq
      %v1564 = vshrl.u32 %v1563, 7
      %v1565 = vsub.s32 %v1562, %v1564
      %v1566 = vrot.slane %v1558, %v1565
      %v1568 = vunpack.c.l.s4 1983009808
      %v1569 = vunpack.c.0.s8 %v1568
      %v1570 = vlaneseq
      %v1571 = vshrl.u32 %v1570, 7
      %v1572 = vsub.s32 %v1569, %v1571
      %v1573 = vrot.slane %v1559, %v1572
      %v1574 = vcombine.low %v1103, %v1115
      %v1575 = vcombine.high %v1103, %v1115
      %v1577 = vunpack.c.l.s4 1983009808
      %v1578 = vunpack.c.0.s8 %v1577
      %v1579 = vlaneseq
      %v1580 = vshrl.u32 %v1579, 7
      %v1581 = vsub.s32 %v1578, %v1580
      %v1582 = vrot.slane %v1574, %v1581
      %v1584 = vunpack.c.l.s4 1983009808
      %v1585 = vunpack.c.0.s8 %v1584
      %v1586 = vlaneseq
      %v1587 = vshrl.u32 %v1586, 7
      %v1588 = vsub.s32 %v1585, %v1587
      %v1589 = vrot.slane %v1575, %v1588
      %v1590 = vcombine.low %v1534, %v1550
      %v1591 = vcombine.high %v1534, %v1550
      %v1593 = vunpack.c.l.s4 1934713408
      %v1594 = vunpack.c.0.s8 %v1593
      %v1595 = vlaneseq
      %v1596 = vshrl.u32 %v1595, 7
      %v1597 = vsub.s32 %v1594, %v1596
      %v1598 = vrot.slane %v1590, %v1597
      %v1600 = vunpack.c.l.s4 1934713408
      %v1601 = vunpack.c.0.s8 %v1600
      %v1602 = vlaneseq
      %v1603 = vshrl.u32 %v1602, 7
      %v1604 = vsub.s32 %v1601, %v1603
      %v1605 = vrot.slane %v1591, %v1604
      %v1606 = vcombine.low %v1541, %v1557
      %v1607 = vcombine.high %v1541, %v1557
      %v1609 = vunpack.c.l.s4 1934713408
      %v1610 = vunpack.c.0.s8 %v1609
      %v1611 = vlaneseq
      %v1612 = vshrl.u32 %v1611, 7
      %v1613 = vsub.s32 %v1610, %v1612
      %v1614 = vrot.slane %v1606, %v1613
      %v1616 = vunpack.c.l.s4 1934713408
      %v1617 = vunpack.c.0.s8 %v1616
      %v1618 = vlaneseq
      %v1619 = vshrl.u32 %v1618, 7
      %v1620 = vsub.s32 %v1617, %v1619
      %v1621 = vrot.slane %v1607, %v1620
      %v1622 = vcombine.low %v1566, %v1582
      %v1623 = vcombine.high %v1566, %v1582
      %v1625 = vunpack.c.l.s4 1934713408
      %v1626 = vunpack.c.0.s8 %v1625
      %v1627 = vlaneseq
      %v1628 = vshrl.u32 %v1627, 7
      %v1629 = vsub.s32 %v1626, %v1628
      %v1630 = vrot.slane %v1622, %v1629
      %v1632 = vunpack.c.l.s4 1934713408
      %v1633 = vunpack.c.0.s8 %v1632
      %v1634 = vlaneseq
      %v1635 = vshrl.u32 %v1634, 7
      %v1636 = vsub.s32 %v1633, %v1635
      %v1637 = vrot.slane %v1623, %v1636
      %v1638 = vcombine.low %v1573, %v1589
      %v1639 = vcombine.high %v1573, %v1589
      %v1641 = vunpack.c.l.s4 1934713408
      %v1642 = vunpack.c.0.s8 %v1641
      %v1643 = vlaneseq
      %v1644 = vshrl.u32 %v1643, 7
      %v1645 = vsub.s32 %v1642, %v1644
      %v1646 = vrot.slane %v1638, %v1645
      %v1648 = vunpack.c.l.s4 1934713408
      %v1649 = vunpack.c.0.s8 %v1648
      %v1650 = vlaneseq
      %v1651 = vshrl.u32 %v1650, 7
      %v1652 = vsub.s32 %v1649, %v1651
      %v1653 = vrot.slane %v1639, %v1652
      %v1654 = vcombine.low %v1598, %v1630
      %v1655 = vcombine.high %v1598, %v1630
      %v1656 = vcombine.low %v1605, %v1637
      %v1657 = vcombine.high %v1605, %v1637
      %v1658 = vcombine.low %v1614, %v1646
      %v1659 = vcombine.high %v1614, %v1646
      %v1660 = vcombine.low %v1621, %v1653
      %v1661 = vcombine.high %v1621, %v1653
      %v1662 = vld [vmem:[%s2] sm:$0xff]
      %v1663 = vld [vmem:[%s2 + $0x8] sm:$0xff]
      %v1665 = vsel %vm909, %v1662, 0
      %v1668 = vsel %vm909, %v1663, 0
      %1670 = vmatprep.subr.mxu0 0.0
      %1671 = vmatpush1.msra.mxu0 %v1246
      %1672 = vmatprep.subr.mxu0 0.0
      %1673 = vmatpush1.msra.mxu0 %v1382
      %1674 = vmatprep.subr.mxu0 0.0
      %1675 = vmatpush1.msra.mxu0 0.0
      %1676 = vmatprep.subr.mxu0 0.0
      %1677 = vmatpush1.msra.mxu0 0.0
      %1678 = vmatprep.subr.mxu0 0.0
      %1679 = vmatpush1.msra.mxu0 0.0
      %1680 = vmatprep.subr.mxu0 0.0
      %1681 = vmatpush1.msra.mxu0 0.0
      %1682 = vmatprep.subr.mxu0 0.0
      %1683 = vmatpush1.msra.mxu0 0.0
      %1684 = vmatprep.subr.mxu0 0.0
      %1685 = vmatpush1.msra.mxu0 0.0
      %1686 = vmatprep.subr.mxu0 0.0
      %1687 = vmatpush1.msra.mxu0 0.0
      %1688 = vmatprep.subr.mxu0 0.0
      %1689 = vmatpush1.msra.mxu0 0.0
      %1690 = vmatprep.subr.mxu0 0.0
      %1691 = vmatpush1.msra.mxu0 0.0
      %1692 = vmatprep.subr.mxu0 0.0
      %1693 = vmatpush1.msra.mxu0 0.0
      %1694 = vmatprep.subr.mxu0 0.0
      %1695 = vmatpush1.msra.mxu0 0.0
      %1696 = vmatprep.subr.mxu0 0.0
      %1697 = vmatpush1.msra.mxu0 0.0
      %1698 = vmatprep.subr.mxu0 0.0
      %1699 = vmatpush1.msra.mxu0 0.0
      %1700 = vmatprep.subr.mxu0 0.0
      %1701 = vmatpush1.msra.mxu0 0.0
      %1702 = vmatprep.subr.mxu0 0.0
      %1703 = vmatpush1.msra.mxu0 0.0
      %1704 = vmatprep.subr.mxu0 0.0
      %1705 = vmatpush1.msra.mxu0 0.0
      %1706 = vmatprep.subr.mxu0 0.0
      %1707 = vmatpush1.msra.mxu0 0.0
      %1708 = vmatprep.subr.mxu0 0.0
      %1709 = vmatpush1.msra.mxu0 0.0
      %1710 = vmatprep.subr.mxu0 0.0
      %1711 = vmatpush1.msra.mxu0 0.0
      %1712 = vmatprep.subr.mxu0 0.0
      %1713 = vmatpush1.msra.mxu0 0.0
      %1714 = vmatprep.subr.mxu0 0.0
      %1715 = vmatpush1.msra.mxu0 0.0
      %1716 = vmatprep.subr.mxu0 0.0
      %1717 = vmatpush1.msra.mxu0 0.0
      %1718 = vmatprep.subr.mxu0 0.0
      %1719 = vmatpush1.msra.mxu0 0.0
      %1720 = vmatprep.subr.mxu0 0.0
      %1721 = vmatpush1.msra.mxu0 0.0
      %1722 = vmatprep.subr.mxu0 0.0
      %1723 = vmatpush1.msra.mxu0 0.0
      %1724 = vmatprep.subr.mxu0 0.0
      %1725 = vmatpush1.msra.mxu0 0.0
      %1726 = vmatprep.subr.mxu0 0.0
      %1727 = vmatpush1.msra.mxu0 0.0
      %1728 = vmatprep.subr.mxu0 0.0
      %1729 = vmatpush1.msra.mxu0 0.0
      %1730 = vmatprep.subr.mxu0 0.0
      %1731 = vmatpush1.msra.mxu0 0.0
      %1732 = vmatprep.subr.mxu0 0.0
      %1733 = vmatpush1.msra.mxu0 0.0
      %1734 = vmatprep.mubr.f32.mxu0 0.0
      %1735 = vmatmul.mubr.f32.gmra.mrb[0].mxu0 %v1665
      %v1736 = vpop.f32.mrb[0].mxu0
      %v1737 = vadd.f32 0.0, %v1736
      %v1738 = vpop.f32.mrb[0].mxu0
      %1739 = vmatprep.mubr.f32.mxu0 0.0
      %1740 = vmatmul.mubr.f32.gmra.mrb[0].mxu0 %v1668
      %v1741 = vpop.f32.mrb[0].mxu0
      %v1742 = vadd.f32 0.0, %v1741
      %v1743 = vpop.f32.mrb[0].mxu0
      %1744 = vdwg.mxu0
      %1745 = vmatprep.subr.mxu0 0.0
      %1746 = vmatpush1.msra.mxu0 %v1247
      %1747 = vmatprep.subr.mxu0 0.0
      %1748 = vmatpush1.msra.mxu0 %v1383
      %1749 = vmatprep.subr.mxu0 0.0
      %1750 = vmatpush1.msra.mxu0 0.0
      %1751 = vmatprep.subr.mxu0 0.0
      %1752 = vmatpush1.msra.mxu0 0.0
      %1753 = vmatprep.subr.mxu0 0.0
      %1754 = vmatpush1.msra.mxu0 0.0
      %1755 = vmatprep.subr.mxu0 0.0
      %1756 = vmatpush1.msra.mxu0 0.0
      %1757 = vmatprep.subr.mxu0 0.0
      %1758 = vmatpush1.msra.mxu0 0.0
      %1759 = vmatprep.subr.mxu0 0.0
      %1760 = vmatpush1.msra.mxu0 0.0
      %1761 = vmatprep.subr.mxu0 0.0
      %1762 = vmatpush1.msra.mxu0 0.0
      %1763 = vmatprep.subr.mxu0 0.0
      %1764 = vmatpush1.msra.mxu0 0.0
      %1765 = vmatprep.subr.mxu0 0.0
      %1766 = vmatpush1.msra.mxu0 0.0
      %1767 = vmatprep.subr.mxu0 0.0
      %1768 = vmatpush1.msra.mxu0 0.0
      %1769 = vmatprep.subr.mxu0 0.0
      %1770 = vmatpush1.msra.mxu0 0.0
      %1771 = vmatprep.subr.mxu0 0.0
      %1772 = vmatpush1.msra.mxu0 0.0
      %1773 = vmatprep.subr.mxu0 0.0
      %1774 = vmatpush1.msra.mxu0 0.0
      %1775 = vmatprep.subr.mxu0 0.0
      %1776 = vmatpush1.msra.mxu0 0.0
      %1777 = vmatprep.subr.mxu0 0.0
      %1778 = vmatpush1.msra.mxu0 0.0
      %1779 = vmatprep.subr.mxu0 0.0
      %1780 = vmatpush1.msra.mxu0 0.0
      %1781 = vmatprep.subr.mxu0 0.0
      %1782 = vmatpush1.msra.mxu0 0.0
      %1783 = vmatprep.subr.mxu0 0.0
      %1784 = vmatpush1.msra.mxu0 0.0
      %1785 = vmatprep.subr.mxu0 0.0
      %1786 = vmatpush1.msra.mxu0 0.0
      %1787 = vmatprep.subr.mxu0 0.0
      %1788 = vmatpush1.msra.mxu0 0.0
      %1789 = vmatprep.subr.mxu0 0.0
      %1790 = vmatpush1.msra.mxu0 0.0
      %1791 = vmatprep.subr.mxu0 0.0
      %1792 = vmatpush1.msra.mxu0 0.0
      %1793 = vmatprep.subr.mxu0 0.0
      %1794 = vmatpush1.msra.mxu0 0.0
      %1795 = vmatprep.subr.mxu0 0.0
      %1796 = vmatpush1.msra.mxu0 0.0
      %1797 = vmatprep.subr.mxu0 0.0
      %1798 = vmatpush1.msra.mxu0 0.0
      %1799 = vmatprep.subr.mxu0 0.0
      %1800 = vmatpush1.msra.mxu0 0.0
      %1801 = vmatprep.subr.mxu0 0.0
      %1802 = vmatpush1.msra.mxu0 0.0
      %1803 = vmatprep.subr.mxu0 0.0
      %1804 = vmatpush1.msra.mxu0 0.0
      %1805 = vmatprep.subr.mxu0 0.0
      %1806 = vmatpush1.msra.mxu0 0.0
      %1807 = vmatprep.subr.mxu0 0.0
      %1808 = vmatpush1.msra.mxu0 0.0
      %1809 = vmatprep.mubr.f32.mxu0 0.0
      %1810 = vmatmul.mubr.f32.gmra.mrb[0].mxu0 %v1665
      %v1811 = vpop.f32.mrb[0].mxu0
      %v1812 = vadd.f32 0.0, %v1811
      %v1813 = vpop.f32.mrb[0].mxu0
      %1814 = vmatprep.mubr.f32.mxu0 0.0
      %1815 = vmatmul.mubr.f32.gmra.mrb[0].mxu0 %v1668
      %v1816 = vpop.f32.mrb[0].mxu0
      %v1817 = vadd.f32 0.0, %v1816
      %v1818 = vpop.f32.mrb[0].mxu0
      %1819 = vdwg.mxu0
      %1820 = vmatprep.subr.mxu0 0.0
      %1821 = vmatpush1.msra.mxu0 %v1248
      %1822 = vmatprep.subr.mxu0 0.0
      %1823 = vmatpush1.msra.mxu0 %v1384
      %1824 = vmatprep.subr.mxu0 0.0
      %1825 = vmatpush1.msra.mxu0 0.0
      %1826 = vmatprep.subr.mxu0 0.0
      %1827 = vmatpush1.msra.mxu0 0.0
      %1828 = vmatprep.subr.mxu0 0.0
      %1829 = vmatpush1.msra.mxu0 0.0
      %1830 = vmatprep.subr.mxu0 0.0
      %1831 = vmatpush1.msra.mxu0 0.0
      %1832 = vmatprep.subr.mxu0 0.0
      %1833 = vmatpush1.msra.mxu0 0.0
      %1834 = vmatprep.subr.mxu0 0.0
      %1835 = vmatpush1.msra.mxu0 0.0
      %1836 = vmatprep.subr.mxu0 0.0
      %1837 = vmatpush1.msra.mxu0 0.0
      %1838 = vmatprep.subr.mxu0 0.0
      %1839 = vmatpush1.msra.mxu0 0.0
      %1840 = vmatprep.subr.mxu0 0.0
      %1841 = vmatpush1.msra.mxu0 0.0
      %1842 = vmatprep.subr.mxu0 0.0
      %1843 = vmatpush1.msra.mxu0 0.0
      %1844 = vmatprep.subr.mxu0 0.0
      %1845 = vmatpush1.msra.mxu0 0.0
      %1846 = vmatprep.subr.mxu0 0.0
      %1847 = vmatpush1.msra.mxu0 0.0
      %1848 = vmatprep.subr.mxu0 0.0
      %1849 = vmatpush1.msra.mxu0 0.0
      %1850 = vmatprep.subr.mxu0 0.0
      %1851 = vmatpush1.msra.mxu0 0.0
      %1852 = vmatprep.subr.mxu0 0.0
      %1853 = vmatpush1.msra.mxu0 0.0
      %1854 = vmatprep.subr.mxu0 0.0
      %1855 = vmatpush1.msra.mxu0 0.0
      %1856 = vmatprep.subr.mxu0 0.0
      %1857 = vmatpush1.msra.mxu0 0.0
      %1858 = vmatprep.subr.mxu0 0.0
      %1859 = vmatpush1.msra.mxu0 0.0
      %1860 = vmatprep.subr.mxu0 0.0
      %1861 = vmatpush1.msra.mxu0 0.0
      %1862 = vmatprep.subr.mxu0 0.0
      %1863 = vmatpush1.msra.mxu0 0.0
      %1864 = vmatprep.subr.mxu0 0.0
      %1865 = vmatpush1.msra.mxu0 0.0
      %1866 = vmatprep.subr.mxu0 0.0
      %1867 = vmatpush1.msra.mxu0 0.0
      %1868 = vmatprep.subr.mxu0 0.0
      %1869 = vmatpush1.msra.mxu0 0.0
      %1870 = vmatprep.subr.mxu0 0.0
      %1871 = vmatpush1.msra.mxu0 0.0
      %1872 = vmatprep.subr.mxu0 0.0
      %1873 = vmatpush1.msra.mxu0 0.0
      %1874 = vmatprep.subr.mxu0 0.0
      %1875 = vmatpush1.msra.mxu0 0.0
      %1876 = vmatprep.subr.mxu0 0.0
      %1877 = vmatpush1.msra.mxu0 0.0
      %1878 = vmatprep.subr.mxu0 0.0
      %1879 = vmatpush1.msra.mxu0 0.0
      %1880 = vmatprep.subr.mxu0 0.0
      %1881 = vmatpush1.msra.mxu0 0.0
      %1882 = vmatprep.subr.mxu0 0.0
      %1883 = vmatpush1.msra.mxu0 0.0
      %1884 = vmatprep.mubr.f32.mxu0 0.0
      %1885 = vmatmul.mubr.f32.gmra.mrb[0].mxu0 %v1665
      %v1886 = vpop.f32.mrb[0].mxu0
      %v1887 = vadd.f32 0.0, %v1886
      %v1888 = vpop.f32.mrb[0].mxu0
      %1889 = vmatprep.mubr.f32.mxu0 0.0
      %1890 = vmatmul.mubr.f32.gmra.mrb[0].mxu0 %v1668
      %v1891 = vpop.f32.mrb[0].mxu0
      %v1892 = vadd.f32 0.0, %v1891
      %v1893 = vpop.f32.mrb[0].mxu0
      %1894 = vdwg.mxu0
      %1895 = vmatprep.subr.mxu0 0.0
      %1896 = vmatpush1.msra.mxu0 %v1249
      %1897 = vmatprep.subr.mxu0 0.0
      %1898 = vmatpush1.msra.mxu0 %v1385
      %1899 = vmatprep.subr.mxu0 0.0
      %1900 = vmatpush1.msra.mxu0 0.0
      %1901 = vmatprep.subr.mxu0 0.0
      %1902 = vmatpush1.msra.mxu0 0.0
      %1903 = vmatprep.subr.mxu0 0.0
      %1904 = vmatpush1.msra.mxu0 0.0
      %1905 = vmatprep.subr.mxu0 0.0
      %1906 = vmatpush1.msra.mxu0 0.0
      %1907 = vmatprep.subr.mxu0 0.0
      %1908 = vmatpush1.msra.mxu0 0.0
      %1909 = vmatprep.subr.mxu0 0.0
      %1910 = vmatpush1.msra.mxu0 0.0
      %1911 = vmatprep.subr.mxu0 0.0
      %1912 = vmatpush1.msra.mxu0 0.0
      %1913 = vmatprep.subr.mxu0 0.0
      %1914 = vmatpush1.msra.mxu0 0.0
      %1915 = vmatprep.subr.mxu0 0.0
      %1916 = vmatpush1.msra.mxu0 0.0
      %1917 = vmatprep.subr.mxu0 0.0
      %1918 = vmatpush1.msra.mxu0 0.0
      %1919 = vmatprep.subr.mxu0 0.0
      %1920 = vmatpush1.msra.mxu0 0.0
      %1921 = vmatprep.subr.mxu0 0.0
      %1922 = vmatpush1.msra.mxu0 0.0
      %1923 = vmatprep.subr.mxu0 0.0
      %1924 = vmatpush1.msra.mxu0 0.0
      %1925 = vmatprep.subr.mxu0 0.0
      %1926 = vmatpush1.msra.mxu0 0.0
      %1927 = vmatprep.subr.mxu0 0.0
      %1928 = vmatpush1.msra.mxu0 0.0
      %1929 = vmatprep.subr.mxu0 0.0
      %1930 = vmatpush1.msra.mxu0 0.0
      %1931 = vmatprep.subr.mxu0 0.0
      %1932 = vmatpush1.msra.mxu0 0.0
      %1933 = vmatprep.subr.mxu0 0.0
      %1934 = vmatpush1.msra.mxu0 0.0
      %1935 = vmatprep.subr.mxu0 0.0
      %1936 = vmatpush1.msra.mxu0 0.0
      %1937 = vmatprep.subr.mxu0 0.0
      %1938 = vmatpush1.msra.mxu0 0.0
      %1939 = vmatprep.subr.mxu0 0.0
      %1940 = vmatpush1.msra.mxu0 0.0
      %1941 = vmatprep.subr.mxu0 0.0
      %1942 = vmatpush1.msra.mxu0 0.0
      %1943 = vmatprep.subr.mxu0 0.0
      %1944 = vmatpush1.msra.mxu0 0.0
      %1945 = vmatprep.subr.mxu0 0.0
      %1946 = vmatpush1.msra.mxu0 0.0
      %1947 = vmatprep.subr.mxu0 0.0
      %1948 = vmatpush1.msra.mxu0 0.0
      %1949 = vmatprep.subr.mxu0 0.0
      %1950 = vmatpush1.msra.mxu0 0.0
      %1951 = vmatprep.subr.mxu0 0.0
      %1952 = vmatpush1.msra.mxu0 0.0
      %1953 = vmatprep.subr.mxu0 0.0
      %1954 = vmatpush1.msra.mxu0 0.0
      %1955 = vmatprep.subr.mxu0 0.0
      %1956 = vmatpush1.msra.mxu0 0.0
      %1957 = vmatprep.subr.mxu0 0.0
      %1958 = vmatpush1.msra.mxu0 0.0
      %1959 = vmatprep.mubr.f32.mxu0 0.0
      %1960 = vmatmul.mubr.f32.gmra.mrb[0].mxu0 %v1665
      %v1961 = vpop.f32.mrb[0].mxu0
      %v1962 = vadd.f32 0.0, %v1961
      %v1963 = vpop.f32.mrb[0].mxu0
      %1964 = vmatprep.mubr.f32.mxu0 0.0
      %1965 = vmatmul.mubr.f32.gmra.mrb[0].mxu0 %v1668
      %v1966 = vpop.f32.mrb[0].mxu0
      %v1967 = vadd.f32 0.0, %v1966
      %v1968 = vpop.f32.mrb[0].mxu0
      %1969 = vdwg.mxu0
      %1970 = vmatprep.subr.mxu0 0.0
      %1971 = vmatpush1.msra.mxu0 %v1250
      %1972 = vmatprep.subr.mxu0 0.0
      %1973 = vmatpush1.msra.mxu0 %v1386
      %1974 = vmatprep.subr.mxu0 0.0
      %1975 = vmatpush1.msra.mxu0 0.0
      %1976 = vmatprep.subr.mxu0 0.0
      %1977 = vmatpush1.msra.mxu0 0.0
      %1978 = vmatprep.subr.mxu0 0.0
      %1979 = vmatpush1.msra.mxu0 0.0
      %1980 = vmatprep.subr.mxu0 0.0
      %1981 = vmatpush1.msra.mxu0 0.0
      %1982 = vmatprep.subr.mxu0 0.0
      %1983 = vmatpush1.msra.mxu0 0.0
      %1984 = vmatprep.subr.mxu0 0.0
      %1985 = vmatpush1.msra.mxu0 0.0
      %1986 = vmatprep.subr.mxu0 0.0
      %1987 = vmatpush1.msra.mxu0 0.0
      %1988 = vmatprep.subr.mxu0 0.0
      %1989 = vmatpush1.msra.mxu0 0.0
      %1990 = vmatprep.subr.mxu0 0.0
      %1991 = vmatpush1.msra.mxu0 0.0
      %1992 = vmatprep.subr.mxu0 0.0
      %1993 = vmatpush1.msra.mxu0 0.0
      %1994 = vmatprep.subr.mxu0 0.0
      %1995 = vmatpush1.msra.mxu0 0.0
      %1996 = vmatprep.subr.mxu0 0.0
      %1997 = vmatpush1.msra.mxu0 0.0
      %1998 = vmatprep.subr.mxu0 0.0
      %1999 = vmatpush1.msra.mxu0 0.0
      %2000 = vmatprep.subr.mxu0 0.0
      %2001 = vmatpush1.msra.mxu0 0.0
      %2002 = vmatprep.subr.mxu0 0.0
      %2003 = vmatpush1.msra.mxu0 0.0
      %2004 = vmatprep.subr.mxu0 0.0
      %2005 = vmatpush1.msra.mxu0 0.0
      %2006 = vmatprep.subr.mxu0 0.0
      %2007 = vmatpush1.msra.mxu0 0.0
      %2008 = vmatprep.subr.mxu0 0.0
      %2009 = vmatpush1.msra.mxu0 0.0
      %2010 = vmatprep.subr.mxu0 0.0
      %2011 = vmatpush1.msra.mxu0 0.0
      %2012 = vmatprep.subr.mxu0 0.0
      %2013 = vmatpush1.msra.mxu0 0.0
      %2014 = vmatprep.subr.mxu0 0.0
      %2015 = vmatpush1.msra.mxu0 0.0
      %2016 = vmatprep.subr.mxu0 0.0
      %2017 = vmatpush1.msra.mxu0 0.0
      %2018 = vmatprep.subr.mxu0 0.0
      %2019 = vmatpush1.msra.mxu0 0.0
      %2020 = vmatprep.subr.mxu0 0.0
      %2021 = vmatpush1.msra.mxu0 0.0
      %2022 = vmatprep.subr.mxu0 0.0
      %2023 = vmatpush1.msra.mxu0 0.0
      %2024 = vmatprep.subr.mxu0 0.0
      %2025 = vmatpush1.msra.mxu0 0.0
      %2026 = vmatprep.subr.mxu0 0.0
      %2027 = vmatpush1.msra.mxu0 0.0
      %2028 = vmatprep.subr.mxu0 0.0
      %2029 = vmatpush1.msra.mxu0 0.0
      %2030 = vmatprep.subr.mxu0 0.0
      %2031 = vmatpush1.msra.mxu0 0.0
      %2032 = vmatprep.subr.mxu0 0.0
      %2033 = vmatpush1.msra.mxu0 0.0
      %2034 = vmatprep.mubr.f32.mxu0 0.0
      %2035 = vmatmul.mubr.f32.gmra.mrb[0].mxu0 %v1665
      %v2036 = vpop.f32.mrb[0].mxu0
      %v2037 = vadd.f32 0.0, %v2036
      %v2038 = vpop.f32.mrb[0].mxu0
      %2039 = vmatprep.mubr.f32.mxu0 0.0
      %2040 = vmatmul.mubr.f32.gmra.mrb[0].mxu0 %v1668
      %v2041 = vpop.f32.mrb[0].mxu0
      %v2042 = vadd.f32 0.0, %v2041
      %v2043 = vpop.f32.mrb[0].mxu0
      %2044 = vdwg.mxu0
      %2045 = vmatprep.subr.mxu0 0.0
      %2046 = vmatpush1.msra.mxu0 %v1251
      %2047 = vmatprep.subr.mxu0 0.0
      %2048 = vmatpush1.msra.mxu0 %v1387
      %2049 = vmatprep.subr.mxu0 0.0
      %2050 = vmatpush1.msra.mxu0 0.0
      %2051 = vmatprep.subr.mxu0 0.0
      %2052 = vmatpush1.msra.mxu0 0.0
      %2053 = vmatprep.subr.mxu0 0.0
      %2054 = vmatpush1.msra.mxu0 0.0
      %2055 = vmatprep.subr.mxu0 0.0
      %2056 = vmatpush1.msra.mxu0 0.0
      %2057 = vmatprep.subr.mxu0 0.0
      %2058 = vmatpush1.msra.mxu0 0.0
      %2059 = vmatprep.subr.mxu0 0.0
      %2060 = vmatpush1.msra.mxu0 0.0
      %2061 = vmatprep.subr.mxu0 0.0
      %2062 = vmatpush1.msra.mxu0 0.0
      %2063 = vmatprep.subr.mxu0 0.0
      %2064 = vmatpush1.msra.mxu0 0.0
      %2065 = vmatprep.subr.mxu0 0.0
      %2066 = vmatpush1.msra.mxu0 0.0
      %2067 = vmatprep.subr.mxu0 0.0
      %2068 = vmatpush1.msra.mxu0 0.0
      %2069 = vmatprep.subr.mxu0 0.0
      %2070 = vmatpush1.msra.mxu0 0.0
      %2071 = vmatprep.subr.mxu0 0.0
      %2072 = vmatpush1.msra.mxu0 0.0
      %2073 = vmatprep.subr.mxu0 0.0
      %2074 = vmatpush1.msra.mxu0 0.0
      %2075 = vmatprep.subr.mxu0 0.0
      %2076 = vmatpush1.msra.mxu0 0.0
      %2077 = vmatprep.subr.mxu0 0.0
      %2078 = vmatpush1.msra.mxu0 0.0
      %2079 = vmatprep.subr.mxu0 0.0
      %2080 = vmatpush1.msra.mxu0 0.0
      %2081 = vmatprep.subr.mxu0 0.0
      %2082 = vmatpush1.msra.mxu0 0.0
      %2083 = vmatprep.subr.mxu0 0.0
      %2084 = vmatpush1.msra.mxu0 0.0
      %2085 = vmatprep.subr.mxu0 0.0
      %2086 = vmatpush1.msra.mxu0 0.0
      %2087 = vmatprep.subr.mxu0 0.0
      %2088 = vmatpush1.msra.mxu0 0.0
      %2089 = vmatprep.subr.mxu0 0.0
      %2090 = vmatpush1.msra.mxu0 0.0
      %2091 = vmatprep.subr.mxu0 0.0
      %2092 = vmatpush1.msra.mxu0 0.0
      %2093 = vmatprep.subr.mxu0 0.0
      %2094 = vmatpush1.msra.mxu0 0.0
      %2095 = vmatprep.subr.mxu0 0.0
      %2096 = vmatpush1.msra.mxu0 0.0
      %2097 = vmatprep.subr.mxu0 0.0
      %2098 = vmatpush1.msra.mxu0 0.0
      %2099 = vmatprep.subr.mxu0 0.0
      %2100 = vmatpush1.msra.mxu0 0.0
      %2101 = vmatprep.subr.mxu0 0.0
      %2102 = vmatpush1.msra.mxu0 0.0
      %2103 = vmatprep.subr.mxu0 0.0
      %2104 = vmatpush1.msra.mxu0 0.0
      %2105 = vmatprep.subr.mxu0 0.0
      %2106 = vmatpush1.msra.mxu0 0.0
      %2107 = vmatprep.subr.mxu0 0.0
      %2108 = vmatpush1.msra.mxu0 0.0
      %2109 = vmatprep.mubr.f32.mxu0 0.0
      %2110 = vmatmul.mubr.f32.gmra.mrb[0].mxu0 %v1665
      %v2111 = vpop.f32.mrb[0].mxu0
      %v2112 = vadd.f32 0.0, %v2111
      %v2113 = vpop.f32.mrb[0].mxu0
      %2114 = vmatprep.mubr.f32.mxu0 0.0
      %2115 = vmatmul.mubr.f32.gmra.mrb[0].mxu0 %v1668
      %v2116 = vpop.f32.mrb[0].mxu0
      %v2117 = vadd.f32 0.0, %v2116
      %v2118 = vpop.f32.mrb[0].mxu0
      %2119 = vdwg.mxu0
      %2120 = vmatprep.subr.mxu0 0.0
      %2121 = vmatpush1.msra.mxu0 %v1252
      %2122 = vmatprep.subr.mxu0 0.0
      %2123 = vmatpush1.msra.mxu0 %v1388
      %2124 = vmatprep.subr.mxu0 0.0
      %2125 = vmatpush1.msra.mxu0 0.0
      %2126 = vmatprep.subr.mxu0 0.0
      %2127 = vmatpush1.msra.mxu0 0.0
      %2128 = vmatprep.subr.mxu0 0.0
      %2129 = vmatpush1.msra.mxu0 0.0
      %2130 = vmatprep.subr.mxu0 0.0
      %2131 = vmatpush1.msra.mxu0 0.0
      %2132 = vmatprep.subr.mxu0 0.0
      %2133 = vmatpush1.msra.mxu0 0.0
      %2134 = vmatprep.subr.mxu0 0.0
      %2135 = vmatpush1.msra.mxu0 0.0
      %2136 = vmatprep.subr.mxu0 0.0
      %2137 = vmatpush1.msra.mxu0 0.0
      %2138 = vmatprep.subr.mxu0 0.0
      %2139 = vmatpush1.msra.mxu0 0.0
      %2140 = vmatprep.subr.mxu0 0.0
      %2141 = vmatpush1.msra.mxu0 0.0
      %2142 = vmatprep.subr.mxu0 0.0
      %2143 = vmatpush1.msra.mxu0 0.0
      %2144 = vmatprep.subr.mxu0 0.0
      %2145 = vmatpush1.msra.mxu0 0.0
      %2146 = vmatprep.subr.mxu0 0.0
      %2147 = vmatpush1.msra.mxu0 0.0
      %2148 = vmatprep.subr.mxu0 0.0
      %2149 = vmatpush1.msra.mxu0 0.0
      %2150 = vmatprep.subr.mxu0 0.0
      %2151 = vmatpush1.msra.mxu0 0.0
      %2152 = vmatprep.subr.mxu0 0.0
      %2153 = vmatpush1.msra.mxu0 0.0
      %2154 = vmatprep.subr.mxu0 0.0
      %2155 = vmatpush1.msra.mxu0 0.0
      %2156 = vmatprep.subr.mxu0 0.0
      %2157 = vmatpush1.msra.mxu0 0.0
      %2158 = vmatprep.subr.mxu0 0.0
      %2159 = vmatpush1.msra.mxu0 0.0
      %2160 = vmatprep.subr.mxu0 0.0
      %2161 = vmatpush1.msra.mxu0 0.0
      %2162 = vmatprep.subr.mxu0 0.0
      %2163 = vmatpush1.msra.mxu0 0.0
      %2164 = vmatprep.subr.mxu0 0.0
      %2165 = vmatpush1.msra.mxu0 0.0
      %2166 = vmatprep.subr.mxu0 0.0
      %2167 = vmatpush1.msra.mxu0 0.0
      %2168 = vmatprep.subr.mxu0 0.0
      %2169 = vmatpush1.msra.mxu0 0.0
      %2170 = vmatprep.subr.mxu0 0.0
      %2171 = vmatpush1.msra.mxu0 0.0
      %2172 = vmatprep.subr.mxu0 0.0
      %2173 = vmatpush1.msra.mxu0 0.0
      %2174 = vmatprep.subr.mxu0 0.0
      %2175 = vmatpush1.msra.mxu0 0.0
      %2176 = vmatprep.subr.mxu0 0.0
      %2177 = vmatpush1.msra.mxu0 0.0
      %2178 = vmatprep.subr.mxu0 0.0
      %2179 = vmatpush1.msra.mxu0 0.0
      %2180 = vmatprep.subr.mxu0 0.0
      %2181 = vmatpush1.msra.mxu0 0.0
      %2182 = vmatprep.subr.mxu0 0.0
      %2183 = vmatpush1.msra.mxu0 0.0
      %2184 = vmatprep.mubr.f32.mxu0 0.0
      %2185 = vmatmul.mubr.f32.gmra.mrb[0].mxu0 %v1665
      %v2186 = vpop.f32.mrb[0].mxu0
      %v2187 = vadd.f32 0.0, %v2186
      %v2188 = vpop.f32.mrb[0].mxu0
      %2189 = vmatprep.mubr.f32.mxu0 0.0
      %2190 = vmatmul.mubr.f32.gmra.mrb[0].mxu0 %v1668
      %v2191 = vpop.f32.mrb[0].mxu0
      %v2192 = vadd.f32 0.0, %v2191
      %v2193 = vpop.f32.mrb[0].mxu0
      %2194 = vdwg.mxu0
      %2195 = vmatprep.subr.mxu0 0.0
      %2196 = vmatpush1.msra.mxu0 %v1253
      %2197 = vmatprep.subr.mxu0 0.0
      %2198 = vmatpush1.msra.mxu0 %v1389
      %2199 = vmatprep.subr.mxu0 0.0
      %2200 = vmatpush1.msra.mxu0 0.0
      %2201 = vmatprep.subr.mxu0 0.0
      %2202 = vmatpush1.msra.mxu0 0.0
      %2203 = vmatprep.subr.mxu0 0.0
      %2204 = vmatpush1.msra.mxu0 0.0
      %2205 = vmatprep.subr.mxu0 0.0
      %2206 = vmatpush1.msra.mxu0 0.0
      %2207 = vmatprep.subr.mxu0 0.0
      %2208 = vmatpush1.msra.mxu0 0.0
      %2209 = vmatprep.subr.mxu0 0.0
      %2210 = vmatpush1.msra.mxu0 0.0
      %2211 = vmatprep.subr.mxu0 0.0
      %2212 = vmatpush1.msra.mxu0 0.0
      %2213 = vmatprep.subr.mxu0 0.0
      %2214 = vmatpush1.msra.mxu0 0.0
      %2215 = vmatprep.subr.mxu0 0.0
      %2216 = vmatpush1.msra.mxu0 0.0
      %2217 = vmatprep.subr.mxu0 0.0
      %2218 = vmatpush1.msra.mxu0 0.0
      %2219 = vmatprep.subr.mxu0 0.0
      %2220 = vmatpush1.msra.mxu0 0.0
      %2221 = vmatprep.subr.mxu0 0.0
      %2222 = vmatpush1.msra.mxu0 0.0
      %2223 = vmatprep.subr.mxu0 0.0
      %2224 = vmatpush1.msra.mxu0 0.0
      %2225 = vmatprep.subr.mxu0 0.0
      %2226 = vmatpush1.msra.mxu0 0.0
      %2227 = vmatprep.subr.mxu0 0.0
      %2228 = vmatpush1.msra.mxu0 0.0
      %2229 = vmatprep.subr.mxu0 0.0
      %2230 = vmatpush1.msra.mxu0 0.0
      %2231 = vmatprep.subr.mxu0 0.0
      %2232 = vmatpush1.msra.mxu0 0.0
      %2233 = vmatprep.subr.mxu0 0.0
      %2234 = vmatpush1.msra.mxu0 0.0
      %2235 = vmatprep.subr.mxu0 0.0
      %2236 = vmatpush1.msra.mxu0 0.0
      %2237 = vmatprep.subr.mxu0 0.0
      %2238 = vmatpush1.msra.mxu0 0.0
      %2239 = vmatprep.subr.mxu0 0.0
      %2240 = vmatpush1.msra.mxu0 0.0
      %2241 = vmatprep.subr.mxu0 0.0
      %2242 = vmatpush1.msra.mxu0 0.0
      %2243 = vmatprep.subr.mxu0 0.0
      %2244 = vmatpush1.msra.mxu0 0.0
      %2245 = vmatprep.subr.mxu0 0.0
      %2246 = vmatpush1.msra.mxu0 0.0
      %2247 = vmatprep.subr.mxu0 0.0
      %2248 = vmatpush1.msra.mxu0 0.0
      %2249 = vmatprep.subr.mxu0 0.0
      %2250 = vmatpush1.msra.mxu0 0.0
      %2251 = vmatprep.subr.mxu0 0.0
      %2252 = vmatpush1.msra.mxu0 0.0
      %2253 = vmatprep.subr.mxu0 0.0
      %2254 = vmatpush1.msra.mxu0 0.0
      %2255 = vmatprep.subr.mxu0 0.0
      %2256 = vmatpush1.msra.mxu0 0.0
      %2257 = vmatprep.subr.mxu0 0.0
      %2258 = vmatpush1.msra.mxu0 0.0
      %2259 = vmatprep.mubr.f32.mxu0 0.0
      %2260 = vmatmul.mubr.f32.gmra.mrb[0].mxu0 %v1665
      %v2261 = vpop.f32.mrb[0].mxu0
      %v2262 = vadd.f32 0.0, %v2261
      %v2263 = vpop.f32.mrb[0].mxu0
      %2264 = vmatprep.mubr.f32.mxu0 0.0
      %2265 = vmatmul.mubr.f32.gmra.mrb[0].mxu0 %v1668
      %v2266 = vpop.f32.mrb[0].mxu0
      %v2267 = vadd.f32 0.0, %v2266
      %v2268 = vpop.f32.mrb[0].mxu0
      %2269 = vdwg.mxu0
      %2270 = vmatprep.subr.mxu0 0.0
      %2271 = vmatpush1.msra.mxu0 %v1518
      %2272 = vmatprep.subr.mxu0 0.0
      %2273 = vmatpush1.msra.mxu0 %v1654
      %2274 = vmatprep.subr.mxu0 0.0
      %2275 = vmatpush1.msra.mxu0 0.0
      %2276 = vmatprep.subr.mxu0 0.0
      %2277 = vmatpush1.msra.mxu0 0.0
      %2278 = vmatprep.subr.mxu0 0.0
      %2279 = vmatpush1.msra.mxu0 0.0
      %2280 = vmatprep.subr.mxu0 0.0
      %2281 = vmatpush1.msra.mxu0 0.0
      %2282 = vmatprep.subr.mxu0 0.0
      %2283 = vmatpush1.msra.mxu0 0.0
      %2284 = vmatprep.subr.mxu0 0.0
      %2285 = vmatpush1.msra.mxu0 0.0
      %2286 = vmatprep.subr.mxu0 0.0
      %2287 = vmatpush1.msra.mxu0 0.0
      %2288 = vmatprep.subr.mxu0 0.0
      %2289 = vmatpush1.msra.mxu0 0.0
      %2290 = vmatprep.subr.mxu0 0.0
      %2291 = vmatpush1.msra.mxu0 0.0
      %2292 = vmatprep.subr.mxu0 0.0
      %2293 = vmatpush1.msra.mxu0 0.0
      %2294 = vmatprep.subr.mxu0 0.0
      %2295 = vmatpush1.msra.mxu0 0.0
      %2296 = vmatprep.subr.mxu0 0.0
      %2297 = vmatpush1.msra.mxu0 0.0
      %2298 = vmatprep.subr.mxu0 0.0
      %2299 = vmatpush1.msra.mxu0 0.0
      %2300 = vmatprep.subr.mxu0 0.0
      %2301 = vmatpush1.msra.mxu0 0.0
      %2302 = vmatprep.subr.mxu0 0.0
      %2303 = vmatpush1.msra.mxu0 0.0
      %2304 = vmatprep.subr.mxu0 0.0
      %2305 = vmatpush1.msra.mxu0 0.0
      %2306 = vmatprep.subr.mxu0 0.0
      %2307 = vmatpush1.msra.mxu0 0.0
      %2308 = vmatprep.subr.mxu0 0.0
      %2309 = vmatpush1.msra.mxu0 0.0
      %2310 = vmatprep.subr.mxu0 0.0
      %2311 = vmatpush1.msra.mxu0 0.0
      %2312 = vmatprep.subr.mxu0 0.0
      %2313 = vmatpush1.msra.mxu0 0.0
      %2314 = vmatprep.subr.mxu0 0.0
      %2315 = vmatpush1.msra.mxu0 0.0
      %2316 = vmatprep.subr.mxu0 0.0
      %2317 = vmatpush1.msra.mxu0 0.0
      %2318 = vmatprep.subr.mxu0 0.0
      %2319 = vmatpush1.msra.mxu0 0.0
      %2320 = vmatprep.subr.mxu0 0.0
      %2321 = vmatpush1.msra.mxu0 0.0
      %2322 = vmatprep.subr.mxu0 0.0
      %2323 = vmatpush1.msra.mxu0 0.0
      %2324 = vmatprep.subr.mxu0 0.0
      %2325 = vmatpush1.msra.mxu0 0.0
      %2326 = vmatprep.subr.mxu0 0.0
      %2327 = vmatpush1.msra.mxu0 0.0
      %2328 = vmatprep.subr.mxu0 0.0
      %2329 = vmatpush1.msra.mxu0 0.0
      %2330 = vmatprep.subr.mxu0 0.0
      %2331 = vmatpush1.msra.mxu0 0.0
      %2332 = vmatprep.subr.mxu0 0.0
      %2333 = vmatpush1.msra.mxu0 0.0
      %2334 = vmatprep.mubr.f32.mxu0 0.0
      %2335 = vmatmul.mubr.f32.gmra.mrb[0].mxu0 %v1665
      %v2336 = vpop.f32.mrb[0].mxu0
      %v2337 = vadd.f32 0.0, %v2336
      %v2338 = vpop.f32.mrb[0].mxu0
      %2339 = vmatprep.mubr.f32.mxu0 0.0
      %2340 = vmatmul.mubr.f32.gmra.mrb[0].mxu0 %v1668
      %v2341 = vpop.f32.mrb[0].mxu0
      %v2342 = vadd.f32 0.0, %v2341
      %v2343 = vpop.f32.mrb[0].mxu0
      %2344 = vdwg.mxu0
      %2345 = vmatprep.subr.mxu0 0.0
      %2346 = vmatpush1.msra.mxu0 %v1519
      %2347 = vmatprep.subr.mxu0 0.0
      %2348 = vmatpush1.msra.mxu0 %v1655
      %2349 = vmatprep.subr.mxu0 0.0
      %2350 = vmatpush1.msra.mxu0 0.0
      %2351 = vmatprep.subr.mxu0 0.0
      %2352 = vmatpush1.msra.mxu0 0.0
      %2353 = vmatprep.subr.mxu0 0.0
      %2354 = vmatpush1.msra.mxu0 0.0
      %2355 = vmatprep.subr.mxu0 0.0
      %2356 = vmatpush1.msra.mxu0 0.0
      %2357 = vmatprep.subr.mxu0 0.0
      %2358 = vmatpush1.msra.mxu0 0.0
      %2359 = vmatprep.subr.mxu0 0.0
      %2360 = vmatpush1.msra.mxu0 0.0
      %2361 = vmatprep.subr.mxu0 0.0
      %2362 = vmatpush1.msra.mxu0 0.0
      %2363 = vmatprep.subr.mxu0 0.0
      %2364 = vmatpush1.msra.mxu0 0.0
      %2365 = vmatprep.subr.mxu0 0.0
      %2366 = vmatpush1.msra.mxu0 0.0
      %2367 = vmatprep.subr.mxu0 0.0
      %2368 = vmatpush1.msra.mxu0 0.0
      %2369 = vmatprep.subr.mxu0 0.0
      %2370 = vmatpush1.msra.mxu0 0.0
      %2371 = vmatprep.subr.mxu0 0.0
      %2372 = vmatpush1.msra.mxu0 0.0
      %2373 = vmatprep.subr.mxu0 0.0
      %2374 = vmatpush1.msra.mxu0 0.0
      %2375 = vmatprep.subr.mxu0 0.0
      %2376 = vmatpush1.msra.mxu0 0.0
      %2377 = vmatprep.subr.mxu0 0.0
      %2378 = vmatpush1.msra.mxu0 0.0
      %2379 = vmatprep.subr.mxu0 0.0
      %2380 = vmatpush1.msra.mxu0 0.0
      %2381 = vmatprep.subr.mxu0 0.0
      %2382 = vmatpush1.msra.mxu0 0.0
      %2383 = vmatprep.subr.mxu0 0.0
      %2384 = vmatpush1.msra.mxu0 0.0
      %2385 = vmatprep.subr.mxu0 0.0
      %2386 = vmatpush1.msra.mxu0 0.0
      %2387 = vmatprep.subr.mxu0 0.0
      %2388 = vmatpush1.msra.mxu0 0.0
      %2389 = vmatprep.subr.mxu0 0.0
      %2390 = vmatpush1.msra.mxu0 0.0
      %2391 = vmatprep.subr.mxu0 0.0
      %2392 = vmatpush1.msra.mxu0 0.0
      %2393 = vmatprep.subr.mxu0 0.0
      %2394 = vmatpush1.msra.mxu0 0.0
      %2395 = vmatprep.subr.mxu0 0.0
      %2396 = vmatpush1.msra.mxu0 0.0
      %2397 = vmatprep.subr.mxu0 0.0
      %2398 = vmatpush1.msra.mxu0 0.0
      %2399 = vmatprep.subr.mxu0 0.0
      %2400 = vmatpush1.msra.mxu0 0.0
      %2401 = vmatprep.subr.mxu0 0.0
      %2402 = vmatpush1.msra.mxu0 0.0
      %2403 = vmatprep.subr.mxu0 0.0
      %2404 = vmatpush1.msra.mxu0 0.0
      %2405 = vmatprep.subr.mxu0 0.0
      %2406 = vmatpush1.msra.mxu0 0.0
      %2407 = vmatprep.subr.mxu0 0.0
      %2408 = vmatpush1.msra.mxu0 0.0
      %2409 = vmatprep.mubr.f32.mxu0 0.0
      %2410 = vmatmul.mubr.f32.gmra.mrb[0].mxu0 %v1665
      %v2411 = vpop.f32.mrb[0].mxu0
      %v2412 = vadd.f32 0.0, %v2411
      %v2413 = vpop.f32.mrb[0].mxu0
      %2414 = vmatprep.mubr.f32.mxu0 0.0
      %2415 = vmatmul.mubr.f32.gmra.mrb[0].mxu0 %v1668
      %v2416 = vpop.f32.mrb[0].mxu0
      %v2417 = vadd.f32 0.0, %v2416
      %v2418 = vpop.f32.mrb[0].mxu0
      %2419 = vdwg.mxu0
      %2420 = vmatprep.subr.mxu0 0.0
      %2421 = vmatpush1.msra.mxu0 %v1520
      %2422 = vmatprep.subr.mxu0 0.0
      %2423 = vmatpush1.msra.mxu0 %v1656
      %2424 = vmatprep.subr.mxu0 0.0
      %2425 = vmatpush1.msra.mxu0 0.0
      %2426 = vmatprep.subr.mxu0 0.0
      %2427 = vmatpush1.msra.mxu0 0.0
      %2428 = vmatprep.subr.mxu0 0.0
      %2429 = vmatpush1.msra.mxu0 0.0
      %2430 = vmatprep.subr.mxu0 0.0
      %2431 = vmatpush1.msra.mxu0 0.0
      %2432 = vmatprep.subr.mxu0 0.0
      %2433 = vmatpush1.msra.mxu0 0.0
      %2434 = vmatprep.subr.mxu0 0.0
      %2435 = vmatpush1.msra.mxu0 0.0
      %2436 = vmatprep.subr.mxu0 0.0
      %2437 = vmatpush1.msra.mxu0 0.0
      %2438 = vmatprep.subr.mxu0 0.0
      %2439 = vmatpush1.msra.mxu0 0.0
      %2440 = vmatprep.subr.mxu0 0.0
      %2441 = vmatpush1.msra.mxu0 0.0
      %2442 = vmatprep.subr.mxu0 0.0
      %2443 = vmatpush1.msra.mxu0 0.0
      %2444 = vmatprep.subr.mxu0 0.0
      %2445 = vmatpush1.msra.mxu0 0.0
      %2446 = vmatprep.subr.mxu0 0.0
      %2447 = vmatpush1.msra.mxu0 0.0
      %2448 = vmatprep.subr.mxu0 0.0
      %2449 = vmatpush1.msra.mxu0 0.0
      %2450 = vmatprep.subr.mxu0 0.0
      %2451 = vmatpush1.msra.mxu0 0.0
      %2452 = vmatprep.subr.mxu0 0.0
      %2453 = vmatpush1.msra.mxu0 0.0
      %2454 = vmatprep.subr.mxu0 0.0
      %2455 = vmatpush1.msra.mxu0 0.0
      %2456 = vmatprep.subr.mxu0 0.0
      %2457 = vmatpush1.msra.mxu0 0.0
      %2458 = vmatprep.subr.mxu0 0.0
      %2459 = vmatpush1.msra.mxu0 0.0
      %2460 = vmatprep.subr.mxu0 0.0
      %2461 = vmatpush1.msra.mxu0 0.0
      %2462 = vmatprep.subr.mxu0 0.0
      %2463 = vmatpush1.msra.mxu0 0.0
      %2464 = vmatprep.subr.mxu0 0.0
      %2465 = vmatpush1.msra.mxu0 0.0
      %2466 = vmatprep.subr.mxu0 0.0
      %2467 = vmatpush1.msra.mxu0 0.0
      %2468 = vmatprep.subr.mxu0 0.0
      %2469 = vmatpush1.msra.mxu0 0.0
      %2470 = vmatprep.subr.mxu0 0.0
      %2471 = vmatpush1.msra.mxu0 0.0
      %2472 = vmatprep.subr.mxu0 0.0
      %2473 = vmatpush1.msra.mxu0 0.0
      %2474 = vmatprep.subr.mxu0 0.0
      %2475 = vmatpush1.msra.mxu0 0.0
      %2476 = vmatprep.subr.mxu0 0.0
      %2477 = vmatpush1.msra.mxu0 0.0
      %2478 = vmatprep.subr.mxu0 0.0
      %2479 = vmatpush1.msra.mxu0 0.0
      %2480 = vmatprep.subr.mxu0 0.0
      %2481 = vmatpush1.msra.mxu0 0.0
      %2482 = vmatprep.subr.mxu0 0.0
      %2483 = vmatpush1.msra.mxu0 0.0
      %2484 = vmatprep.mubr.f32.mxu0 0.0
      %2485 = vmatmul.mubr.f32.gmra.mrb[0].mxu0 %v1665
      %v2486 = vpop.f32.mrb[0].mxu0
      %v2487 = vadd.f32 0.0, %v2486
      %v2488 = vpop.f32.mrb[0].mxu0
      %2489 = vmatprep.mubr.f32.mxu0 0.0
      %2490 = vmatmul.mubr.f32.gmra.mrb[0].mxu0 %v1668
      %v2491 = vpop.f32.mrb[0].mxu0
      %v2492 = vadd.f32 0.0, %v2491
      %v2493 = vpop.f32.mrb[0].mxu0
      %2494 = vdwg.mxu0
      %2495 = vmatprep.subr.mxu0 0.0
      %2496 = vmatpush1.msra.mxu0 %v1521
      %2497 = vmatprep.subr.mxu0 0.0
      %2498 = vmatpush1.msra.mxu0 %v1657
      %2499 = vmatprep.subr.mxu0 0.0
      %2500 = vmatpush1.msra.mxu0 0.0
      %2501 = vmatprep.subr.mxu0 0.0
      %2502 = vmatpush1.msra.mxu0 0.0
      %2503 = vmatprep.subr.mxu0 0.0
      %2504 = vmatpush1.msra.mxu0 0.0
      %2505 = vmatprep.subr.mxu0 0.0
      %2506 = vmatpush1.msra.mxu0 0.0
      %2507 = vmatprep.subr.mxu0 0.0
      %2508 = vmatpush1.msra.mxu0 0.0
      %2509 = vmatprep.subr.mxu0 0.0
      %2510 = vmatpush1.msra.mxu0 0.0
      %2511 = vmatprep.subr.mxu0 0.0
      %2512 = vmatpush1.msra.mxu0 0.0
      %2513 = vmatprep.subr.mxu0 0.0
      %2514 = vmatpush1.msra.mxu0 0.0
      %2515 = vmatprep.subr.mxu0 0.0
      %2516 = vmatpush1.msra.mxu0 0.0
      %2517 = vmatprep.subr.mxu0 0.0
      %2518 = vmatpush1.msra.mxu0 0.0
      %2519 = vmatprep.subr.mxu0 0.0
      %2520 = vmatpush1.msra.mxu0 0.0
      %2521 = vmatprep.subr.mxu0 0.0
      %2522 = vmatpush1.msra.mxu0 0.0
      %2523 = vmatprep.subr.mxu0 0.0
      %2524 = vmatpush1.msra.mxu0 0.0
      %2525 = vmatprep.subr.mxu0 0.0
      %2526 = vmatpush1.msra.mxu0 0.0
      %2527 = vmatprep.subr.mxu0 0.0
      %2528 = vmatpush1.msra.mxu0 0.0
      %2529 = vmatprep.subr.mxu0 0.0
      %2530 = vmatpush1.msra.mxu0 0.0
      %2531 = vmatprep.subr.mxu0 0.0
      %2532 = vmatpush1.msra.mxu0 0.0
      %2533 = vmatprep.subr.mxu0 0.0
      %2534 = vmatpush1.msra.mxu0 0.0
      %2535 = vmatprep.subr.mxu0 0.0
      %2536 = vmatpush1.msra.mxu0 0.0
      %2537 = vmatprep.subr.mxu0 0.0
      %2538 = vmatpush1.msra.mxu0 0.0
      %2539 = vmatprep.subr.mxu0 0.0
      %2540 = vmatpush1.msra.mxu0 0.0
      %2541 = vmatprep.subr.mxu0 0.0
      %2542 = vmatpush1.msra.mxu0 0.0
      %2543 = vmatprep.subr.mxu0 0.0
      %2544 = vmatpush1.msra.mxu0 0.0
      %2545 = vmatprep.subr.mxu0 0.0
      %2546 = vmatpush1.msra.mxu0 0.0
      %2547 = vmatprep.subr.mxu0 0.0
      %2548 = vmatpush1.msra.mxu0 0.0
      %2549 = vmatprep.subr.mxu0 0.0
      %2550 = vmatpush1.msra.mxu0 0.0
      %2551 = vmatprep.subr.mxu0 0.0
      %2552 = vmatpush1.msra.mxu0 0.0
      %2553 = vmatprep.subr.mxu0 0.0
      %2554 = vmatpush1.msra.mxu0 0.0
      %2555 = vmatprep.subr.mxu0 0.0
      %2556 = vmatpush1.msra.mxu0 0.0
      %2557 = vmatprep.subr.mxu0 0.0
      %2558 = vmatpush1.msra.mxu0 0.0
      %2559 = vmatprep.mubr.f32.mxu0 0.0
      %2560 = vmatmul.mubr.f32.gmra.mrb[0].mxu0 %v1665
      %v2561 = vpop.f32.mrb[0].mxu0
      %v2562 = vadd.f32 0.0, %v2561
      %v2563 = vpop.f32.mrb[0].mxu0
      %2564 = vmatprep.mubr.f32.mxu0 0.0
      %2565 = vmatmul.mubr.f32.gmra.mrb[0].mxu0 %v1668
      %v2566 = vpop.f32.mrb[0].mxu0
      %v2567 = vadd.f32 0.0, %v2566
      %v2568 = vpop.f32.mrb[0].mxu0
      %2569 = vdwg.mxu0
      %2570 = vmatprep.subr.mxu0 0.0
      %2571 = vmatpush1.msra.mxu0 %v1522
      %2572 = vmatprep.subr.mxu0 0.0
      %2573 = vmatpush1.msra.mxu0 %v1658
      %2574 = vmatprep.subr.mxu0 0.0
      %2575 = vmatpush1.msra.mxu0 0.0
      %2576 = vmatprep.subr.mxu0 0.0
      %2577 = vmatpush1.msra.mxu0 0.0
      %2578 = vmatprep.subr.mxu0 0.0
      %2579 = vmatpush1.msra.mxu0 0.0
      %2580 = vmatprep.subr.mxu0 0.0
      %2581 = vmatpush1.msra.mxu0 0.0
      %2582 = vmatprep.subr.mxu0 0.0
      %2583 = vmatpush1.msra.mxu0 0.0
      %2584 = vmatprep.subr.mxu0 0.0
      %2585 = vmatpush1.msra.mxu0 0.0
      %2586 = vmatprep.subr.mxu0 0.0
      %2587 = vmatpush1.msra.mxu0 0.0
      %2588 = vmatprep.subr.mxu0 0.0
      %2589 = vmatpush1.msra.mxu0 0.0
      %2590 = vmatprep.subr.mxu0 0.0
      %2591 = vmatpush1.msra.mxu0 0.0
      %2592 = vmatprep.subr.mxu0 0.0
      %2593 = vmatpush1.msra.mxu0 0.0
      %2594 = vmatprep.subr.mxu0 0.0
      %2595 = vmatpush1.msra.mxu0 0.0
      %2596 = vmatprep.subr.mxu0 0.0
      %2597 = vmatpush1.msra.mxu0 0.0
      %2598 = vmatprep.subr.mxu0 0.0
      %2599 = vmatpush1.msra.mxu0 0.0
      %2600 = vmatprep.subr.mxu0 0.0
      %2601 = vmatpush1.msra.mxu0 0.0
      %2602 = vmatprep.subr.mxu0 0.0
      %2603 = vmatpush1.msra.mxu0 0.0
      %2604 = vmatprep.subr.mxu0 0.0
      %2605 = vmatpush1.msra.mxu0 0.0
      %2606 = vmatprep.subr.mxu0 0.0
      %2607 = vmatpush1.msra.mxu0 0.0
      %2608 = vmatprep.subr.mxu0 0.0
      %2609 = vmatpush1.msra.mxu0 0.0
      %2610 = vmatprep.subr.mxu0 0.0
      %2611 = vmatpush1.msra.mxu0 0.0
      %2612 = vmatprep.subr.mxu0 0.0
      %2613 = vmatpush1.msra.mxu0 0.0
      %2614 = vmatprep.subr.mxu0 0.0
      %2615 = vmatpush1.msra.mxu0 0.0
      %2616 = vmatprep.subr.mxu0 0.0
      %2617 = vmatpush1.msra.mxu0 0.0
      %2618 = vmatprep.subr.mxu0 0.0
      %2619 = vmatpush1.msra.mxu0 0.0
      %2620 = vmatprep.subr.mxu0 0.0
      %2621 = vmatpush1.msra.mxu0 0.0
      %2622 = vmatprep.subr.mxu0 0.0
      %2623 = vmatpush1.msra.mxu0 0.0
      %2624 = vmatprep.subr.mxu0 0.0
      %2625 = vmatpush1.msra.mxu0 0.0
      %2626 = vmatprep.subr.mxu0 0.0
      %2627 = vmatpush1.msra.mxu0 0.0
      %2628 = vmatprep.subr.mxu0 0.0
      %2629 = vmatpush1.msra.mxu0 0.0
      %2630 = vmatprep.subr.mxu0 0.0
      %2631 = vmatpush1.msra.mxu0 0.0
      %2632 = vmatprep.subr.mxu0 0.0
      %2633 = vmatpush1.msra.mxu0 0.0
      %2634 = vmatprep.mubr.f32.mxu0 0.0
      %2635 = vmatmul.mubr.f32.gmra.mrb[0].mxu0 %v1665
      %v2636 = vpop.f32.mrb[0].mxu0
      %v2637 = vadd.f32 0.0, %v2636
      %v2638 = vpop.f32.mrb[0].mxu0
      %2639 = vmatprep.mubr.f32.mxu0 0.0
      %2640 = vmatmul.mubr.f32.gmra.mrb[0].mxu0 %v1668
      %v2641 = vpop.f32.mrb[0].mxu0
      %v2642 = vadd.f32 0.0, %v2641
      %v2643 = vpop.f32.mrb[0].mxu0
      %2644 = vdwg.mxu0
      %2645 = vmatprep.subr.mxu0 0.0
      %2646 = vmatpush1.msra.mxu0 %v1523
      %2647 = vmatprep.subr.mxu0 0.0
      %2648 = vmatpush1.msra.mxu0 %v1659
      %2649 = vmatprep.subr.mxu0 0.0
      %2650 = vmatpush1.msra.mxu0 0.0
      %2651 = vmatprep.subr.mxu0 0.0
      %2652 = vmatpush1.msra.mxu0 0.0
      %2653 = vmatprep.subr.mxu0 0.0
      %2654 = vmatpush1.msra.mxu0 0.0
      %2655 = vmatprep.subr.mxu0 0.0
      %2656 = vmatpush1.msra.mxu0 0.0
      %2657 = vmatprep.subr.mxu0 0.0
      %2658 = vmatpush1.msra.mxu0 0.0
      %2659 = vmatprep.subr.mxu0 0.0
      %2660 = vmatpush1.msra.mxu0 0.0
      %2661 = vmatprep.subr.mxu0 0.0
      %2662 = vmatpush1.msra.mxu0 0.0
      %2663 = vmatprep.subr.mxu0 0.0
      %2664 = vmatpush1.msra.mxu0 0.0
      %2665 = vmatprep.subr.mxu0 0.0
      %2666 = vmatpush1.msra.mxu0 0.0
      %2667 = vmatprep.subr.mxu0 0.0
      %2668 = vmatpush1.msra.mxu0 0.0
      %2669 = vmatprep.subr.mxu0 0.0
      %2670 = vmatpush1.msra.mxu0 0.0
      %2671 = vmatprep.subr.mxu0 0.0
      %2672 = vmatpush1.msra.mxu0 0.0
      %2673 = vmatprep.subr.mxu0 0.0
      %2674 = vmatpush1.msra.mxu0 0.0
      %2675 = vmatprep.subr.mxu0 0.0
      %2676 = vmatpush1.msra.mxu0 0.0
      %2677 = vmatprep.subr.mxu0 0.0
      %2678 = vmatpush1.msra.mxu0 0.0
      %2679 = vmatprep.subr.mxu0 0.0
      %2680 = vmatpush1.msra.mxu0 0.0
      %2681 = vmatprep.subr.mxu0 0.0
      %2682 = vmatpush1.msra.mxu0 0.0
      %2683 = vmatprep.subr.mxu0 0.0
      %2684 = vmatpush1.msra.mxu0 0.0
      %2685 = vmatprep.subr.mxu0 0.0
      %2686 = vmatpush1.msra.mxu0 0.0
      %2687 = vmatprep.subr.mxu0 0.0
      %2688 = vmatpush1.msra.mxu0 0.0
      %2689 = vmatprep.subr.mxu0 0.0
      %2690 = vmatpush1.msra.mxu0 0.0
      %2691 = vmatprep.subr.mxu0 0.0
      %2692 = vmatpush1.msra.mxu0 0.0
      %2693 = vmatprep.subr.mxu0 0.0
      %2694 = vmatpush1.msra.mxu0 0.0
      %2695 = vmatprep.subr.mxu0 0.0
      %2696 = vmatpush1.msra.mxu0 0.0
      %2697 = vmatprep.subr.mxu0 0.0
      %2698 = vmatpush1.msra.mxu0 0.0
      %2699 = vmatprep.subr.mxu0 0.0
      %2700 = vmatpush1.msra.mxu0 0.0
      %2701 = vmatprep.subr.mxu0 0.0
      %2702 = vmatpush1.msra.mxu0 0.0
      %2703 = vmatprep.subr.mxu0 0.0
      %2704 = vmatpush1.msra.mxu0 0.0
      %2705 = vmatprep.subr.mxu0 0.0
      %2706 = vmatpush1.msra.mxu0 0.0
      %2707 = vmatprep.subr.mxu0 0.0
      %2708 = vmatpush1.msra.mxu0 0.0
      %2709 = vmatprep.mubr.f32.mxu0 0.0
      %2710 = vmatmul.mubr.f32.gmra.mrb[0].mxu0 %v1665
      %v2711 = vpop.f32.mrb[0].mxu0
      %v2712 = vadd.f32 0.0, %v2711
      %v2713 = vpop.f32.mrb[0].mxu0
      %2714 = vmatprep.mubr.f32.mxu0 0.0
      %2715 = vmatmul.mubr.f32.gmra.mrb[0].mxu0 %v1668
      %v2716 = vpop.f32.mrb[0].mxu0
      %v2717 = vadd.f32 0.0, %v2716
      %v2718 = vpop.f32.mrb[0].mxu0
      %2719 = vdwg.mxu0
      %2720 = vmatprep.subr.mxu0 0.0
      %2721 = vmatpush1.msra.mxu0 %v1524
      %2722 = vmatprep.subr.mxu0 0.0
      %2723 = vmatpush1.msra.mxu0 %v1660
      %2724 = vmatprep.subr.mxu0 0.0
      %2725 = vmatpush1.msra.mxu0 0.0
      %2726 = vmatprep.subr.mxu0 0.0
      %2727 = vmatpush1.msra.mxu0 0.0
      %2728 = vmatprep.subr.mxu0 0.0
      %2729 = vmatpush1.msra.mxu0 0.0
      %2730 = vmatprep.subr.mxu0 0.0
      %2731 = vmatpush1.msra.mxu0 0.0
      %2732 = vmatprep.subr.mxu0 0.0
      %2733 = vmatpush1.msra.mxu0 0.0
      %2734 = vmatprep.subr.mxu0 0.0
      %2735 = vmatpush1.msra.mxu0 0.0
      %2736 = vmatprep.subr.mxu0 0.0
      %2737 = vmatpush1.msra.mxu0 0.0
      %2738 = vmatprep.subr.mxu0 0.0
      %2739 = vmatpush1.msra.mxu0 0.0
      %2740 = vmatprep.subr.mxu0 0.0
      %2741 = vmatpush1.msra.mxu0 0.0
      %2742 = vmatprep.subr.mxu0 0.0
      %2743 = vmatpush1.msra.mxu0 0.0
      %2744 = vmatprep.subr.mxu0 0.0
      %2745 = vmatpush1.msra.mxu0 0.0
      %2746 = vmatprep.subr.mxu0 0.0
      %2747 = vmatpush1.msra.mxu0 0.0
      %2748 = vmatprep.subr.mxu0 0.0
      %2749 = vmatpush1.msra.mxu0 0.0
      %2750 = vmatprep.subr.mxu0 0.0
      %2751 = vmatpush1.msra.mxu0 0.0
      %2752 = vmatprep.subr.mxu0 0.0
      %2753 = vmatpush1.msra.mxu0 0.0
      %2754 = vmatprep.subr.mxu0 0.0
      %2755 = vmatpush1.msra.mxu0 0.0
      %2756 = vmatprep.subr.mxu0 0.0
      %2757 = vmatpush1.msra.mxu0 0.0
      %2758 = vmatprep.subr.mxu0 0.0
      %2759 = vmatpush1.msra.mxu0 0.0
      %2760 = vmatprep.subr.mxu0 0.0
      %2761 = vmatpush1.msra.mxu0 0.0
      %2762 = vmatprep.subr.mxu0 0.0
      %2763 = vmatpush1.msra.mxu0 0.0
      %2764 = vmatprep.subr.mxu0 0.0
      %2765 = vmatpush1.msra.mxu0 0.0
      %2766 = vmatprep.subr.mxu0 0.0
      %2767 = vmatpush1.msra.mxu0 0.0
      %2768 = vmatprep.subr.mxu0 0.0
      %2769 = vmatpush1.msra.mxu0 0.0
      %2770 = vmatprep.subr.mxu0 0.0
      %2771 = vmatpush1.msra.mxu0 0.0
      %2772 = vmatprep.subr.mxu0 0.0
      %2773 = vmatpush1.msra.mxu0 0.0
      %2774 = vmatprep.subr.mxu0 0.0
      %2775 = vmatpush1.msra.mxu0 0.0
      %2776 = vmatprep.subr.mxu0 0.0
      %2777 = vmatpush1.msra.mxu0 0.0
      %2778 = vmatprep.subr.mxu0 0.0
      %2779 = vmatpush1.msra.mxu0 0.0
      %2780 = vmatprep.subr.mxu0 0.0
      %2781 = vmatpush1.msra.mxu0 0.0
      %2782 = vmatprep.subr.mxu0 0.0
      %2783 = vmatpush1.msra.mxu0 0.0
      %2784 = vmatprep.mubr.f32.mxu0 0.0
      %2785 = vmatmul.mubr.f32.gmra.mrb[0].mxu0 %v1665
      %v2786 = vpop.f32.mrb[0].mxu0
      %v2787 = vadd.f32 0.0, %v2786
      %v2788 = vpop.f32.mrb[0].mxu0
      %2789 = vmatprep.mubr.f32.mxu0 0.0
      %2790 = vmatmul.mubr.f32.gmra.mrb[0].mxu0 %v1668
      %v2791 = vpop.f32.mrb[0].mxu0
      %v2792 = vadd.f32 0.0, %v2791
      %v2793 = vpop.f32.mrb[0].mxu0
      %2794 = vdwg.mxu0
      %2795 = vmatprep.subr.mxu0 0.0
      %2796 = vmatpush1.msra.mxu0 %v1525
      %2797 = vmatprep.subr.mxu0 0.0
      %2798 = vmatpush1.msra.mxu0 %v1661
      %2799 = vmatprep.subr.mxu0 0.0
      %2800 = vmatpush1.msra.mxu0 0.0
      %2801 = vmatprep.subr.mxu0 0.0
      %2802 = vmatpush1.msra.mxu0 0.0
      %2803 = vmatprep.subr.mxu0 0.0
      %2804 = vmatpush1.msra.mxu0 0.0
      %2805 = vmatprep.subr.mxu0 0.0
      %2806 = vmatpush1.msra.mxu0 0.0
      %2807 = vmatprep.subr.mxu0 0.0
      %2808 = vmatpush1.msra.mxu0 0.0
      %2809 = vmatprep.subr.mxu0 0.0
      %2810 = vmatpush1.msra.mxu0 0.0
      %2811 = vmatprep.subr.mxu0 0.0
      %2812 = vmatpush1.msra.mxu0 0.0
      %2813 = vmatprep.subr.mxu0 0.0
      %2814 = vmatpush1.msra.mxu0 0.0
      %2815 = vmatprep.subr.mxu0 0.0
      %2816 = vmatpush1.msra.mxu0 0.0
      %2817 = vmatprep.subr.mxu0 0.0
      %2818 = vmatpush1.msra.mxu0 0.0
      %2819 = vmatprep.subr.mxu0 0.0
      %2820 = vmatpush1.msra.mxu0 0.0
      %2821 = vmatprep.subr.mxu0 0.0
      %2822 = vmatpush1.msra.mxu0 0.0
      %2823 = vmatprep.subr.mxu0 0.0
      %2824 = vmatpush1.msra.mxu0 0.0
      %2825 = vmatprep.subr.mxu0 0.0
      %2826 = vmatpush1.msra.mxu0 0.0
      %2827 = vmatprep.subr.mxu0 0.0
      %2828 = vmatpush1.msra.mxu0 0.0
      %2829 = vmatprep.subr.mxu0 0.0
      %2830 = vmatpush1.msra.mxu0 0.0
      %2831 = vmatprep.subr.mxu0 0.0
      %2832 = vmatpush1.msra.mxu0 0.0
      %2833 = vmatprep.subr.mxu0 0.0
      %2834 = vmatpush1.msra.mxu0 0.0
      %2835 = vmatprep.subr.mxu0 0.0
      %2836 = vmatpush1.msra.mxu0 0.0
      %2837 = vmatprep.subr.mxu0 0.0
      %2838 = vmatpush1.msra.mxu0 0.0
      %2839 = vmatprep.subr.mxu0 0.0
      %2840 = vmatpush1.msra.mxu0 0.0
      %2841 = vmatprep.subr.mxu0 0.0
      %2842 = vmatpush1.msra.mxu0 0.0
      %2843 = vmatprep.subr.mxu0 0.0
      %2844 = vmatpush1.msra.mxu0 0.0
      %2845 = vmatprep.subr.mxu0 0.0
      %2846 = vmatpush1.msra.mxu0 0.0
      %2847 = vmatprep.subr.mxu0 0.0
      %2848 = vmatpush1.msra.mxu0 0.0
      %2849 = vmatprep.subr.mxu0 0.0
      %2850 = vmatpush1.msra.mxu0 0.0
      %2851 = vmatprep.subr.mxu0 0.0
      %2852 = vmatpush1.msra.mxu0 0.0
      %2853 = vmatprep.subr.mxu0 0.0
      %2854 = vmatpush1.msra.mxu0 0.0
      %2855 = vmatprep.subr.mxu0 0.0
      %2856 = vmatpush1.msra.mxu0 0.0
      %2857 = vmatprep.subr.mxu0 0.0
      %2858 = vmatpush1.msra.mxu0 0.0
      %2859 = vmatprep.mubr.f32.mxu0 0.0
      %2860 = vmatmul.mubr.f32.gmra.mrb[0].mxu0 %v1665
      %v2861 = vpop.f32.mrb[0].mxu0
      %v2862 = vadd.f32 0.0, %v2861
      %v2863 = vpop.f32.mrb[0].mxu0
      %2864 = vmatprep.mubr.f32.mxu0 0.0
      %2865 = vmatmul.mubr.f32.gmra.mrb[0].mxu0 %v1668
      %v2866 = vpop.f32.mrb[0].mxu0
      %v2867 = vadd.f32 0.0, %v2866
      %v2868 = vpop.f32.mrb[0].mxu0
      %2869 = vdwg.mxu0
      %2870 = vst.msk [vmem:[%s201] sm:$0xff] %vm900, %v1737
      %2871 = vst.msk [vmem:[%s201 + $0x8] sm:$0xff] %vm900, %v1742
      %2872 = vst.msk [vmem:[%s201 + $0x10] sm:$0xff] %vm900, %v1812
      %2873 = vst.msk [vmem:[%s201 + $0x18] sm:$0xff] %vm900, %v1817
      %2874 = vst.msk [vmem:[%s201 + $0x20] sm:$0xff] %vm900, %v1887
      %2875 = vst.msk [vmem:[%s201 + $0x28] sm:$0xff] %vm900, %v1892
      %2876 = vst.msk [vmem:[%s201 + $0x30] sm:$0xff] %vm900, %v1962
      %2877 = vst.msk [vmem:[%s201 + $0x38] sm:$0xff] %vm900, %v1967
      %2878 = vst.msk [vmem:[%s201 + $0x40] sm:$0xff] %vm900, %v2037
      %2879 = vst.msk [vmem:[%s201 + $0x48] sm:$0xff] %vm900, %v2042
      %2880 = vst.msk [vmem:[%s201 + $0x50] sm:$0xff] %vm900, %v2112
      %2881 = vst.msk [vmem:[%s201 + $0x58] sm:$0xff] %vm900, %v2117
      %2882 = vst.msk [vmem:[%s201 + $0x60] sm:$0xff] %vm900, %v2187
      %2883 = vst.msk [vmem:[%s201 + $0x68] sm:$0xff] %vm900, %v2192
      %2884 = vst.msk [vmem:[%s201 + $0x70] sm:$0xff] %vm900, %v2262
      %2885 = vst.msk [vmem:[%s201 + $0x78] sm:$0xff] %vm900, %v2267
      %2886 = vst.msk [vmem:[%s201 + $0x80] sm:$0xff] %vm900, %v2337
      %2887 = vst.msk [vmem:[%s201 + $0x88] sm:$0xff] %vm900, %v2342
      %2888 = vst.msk [vmem:[%s201 + $0x90] sm:$0xff] %vm900, %v2412
      %2889 = vst.msk [vmem:[%s201 + $0x98] sm:$0xff] %vm900, %v2417
      %2890 = vst.msk [vmem:[%s201 + $0xa0] sm:$0xff] %vm900, %v2487
      %2891 = vst.msk [vmem:[%s201 + $0xa8] sm:$0xff] %vm900, %v2492
      %2892 = vst.msk [vmem:[%s201 + $0xb0] sm:$0xff] %vm900, %v2562
      %2893 = vst.msk [vmem:[%s201 + $0xb8] sm:$0xff] %vm900, %v2567
      %2894 = vst.msk [vmem:[%s201 + $0xc0] sm:$0xff] %vm900, %v2637
      %2895 = vst.msk [vmem:[%s201 + $0xc8] sm:$0xff] %vm900, %v2642
      %2896 = vst.msk [vmem:[%s201 + $0xd0] sm:$0xff] %vm900, %v2712
      %2897 = vst.msk [vmem:[%s201 + $0xd8] sm:$0xff] %vm900, %v2717
      %2898 = vst.msk [vmem:[%s201 + $0xe0] sm:$0xff] %vm900, %v2787
      %2899 = vst.msk [vmem:[%s201 + $0xe8] sm:$0xff] %vm900, %v2792
      %2900 = vst.msk [vmem:[%s201 + $0xf0] sm:$0xff] %vm900, %v2862
      %2901 = vst.msk [vmem:[%s201 + $0xf8] sm:$0xff] %vm900, %v2867
      %p2902 = scmp.lt.s32.totalorder %s18, 1
      %s2903 = scalar_select %p2902, %s18, 1
      %p2904 = scmp.lt.s32.totalorder %s19, 0
      %s2905 = scalar_select %p2904, %s19, 0
      %s2906 = smul.addr %s2903, 32
      %s2907 = sadd.s32 %s2905, %s2906
      %s2908 = smul.addr %s2907, 8
      %s2909 = scalar_lea.vmem %s3, %s2908
      // Predicated region
      $region33: #{tpu_custom_call.1} parent=31 // pred_check
        %p2910 = pneg %p116
      $region34: #{tpu_custom_call.1} parent=31 // pred_check_branch
        %2912 = sbr.rel (%p2910) target = $region36
      $region35: #{tpu_custom_call.1} parent=31 // pred_region
        _
      $region36: #{tpu_custom_call.1} parent=31 // pred_fallthru
        _
    $region32: #{tpu_custom_call.1} parent=5 // pred_fallthru
      _
    %p2913 = scmp.le.s32.totalorder 2, %s9
    // Predicated region
    $region37: #{tpu_custom_call.1} parent=5 // pred_check
      %p2914 = pneg %p2913
    $region38: #{tpu_custom_call.1} parent=5 // pred_check_branch
      %2916 = sbr.rel (%p2914) target = $region40
    $region39: #{tpu_custom_call.1} parent=5 // pred_region
      %s2917 = ssub.s32 %s9, 2
      // Predicated region
      $region41: #{tpu_custom_call.1} parent=39 // pred_check
        %p2918 = pneg %p122
      $region42: #{tpu_custom_call.1} parent=39 // pred_check_branch
        %2920 = sbr.rel (%p2918) target = $region44
      $region43: #{tpu_custom_call.1} parent=39 // pred_region
        %p2921 = scmp.lt.s32.totalorder %s20, 1
        %s2922 = scalar_select %p2921, %s20, 1
        %p2923 = scmp.lt.s32.totalorder %s21, 0
        %s2924 = scalar_select %p2923, %s21, 0
        %s2925 = smul.addr %s2922, 32
        %s2926 = sadd.s32 %s2924, %s2925
        %s2927 = smul.addr %s2926, 8
        %s2928 = scalar_lea.vmem %s3, %s2927
      $region44: #{tpu_custom_call.1} parent=39 // pred_fallthru
        _
    $region40: #{tpu_custom_call.1} parent=5 // pred_fallthru
      _
  $region6: #{tpu_custom_call.1} parent=0 // loop_footer
    %s13 = sadd.s32 1, %s9
  $region7: #{tpu_custom_call.1} parent=0 // loop_footer_branch
    %8 = sbr.rel target = $region3
  $region8: #{tpu_custom_call.1} parent=0 // loop_exit
    _

</llo_original>
